<compile_context>
chip_gen: v5e
topology: v5e:2x2
jax: 0.10.0
libtpu: 0.0.40
codegen_flags: <defaults>
</compile_context>

<pallas_src>
import math
import functools

import jax
import jax.numpy as jnp
from jax import lax
from jax.experimental import pallas as pl
from jax.experimental.pallas import tpu as pltpu

STORE_DTYPE = jnp.bfloat16

_CompilerParams = getattr(pltpu, "CompilerParams", None)
if _CompilerParams is None:                      # pragma: no cover (older jax)
    _CompilerParams = getattr(pltpu, "TPUCompilerParams")


def _cparams(*sem, vmem_mb=None):
    kw = dict(dimension_semantics=tuple(sem))
    if vmem_mb is not None:
        kw["vmem_limit_bytes"] = vmem_mb * 1024 * 1024
    return _CompilerParams(**kw)


def _divisor_tile(n, target, mult=8):
    """Largest divisor of n <= target that is a multiple of `mult` (or n itself)."""
    t = min(target, n)
    for cand in range(t, 0, -1):
        if n % cand == 0 and (cand % mult == 0 or cand == n):
            return cand
    return n


def _row_plan(n, target=2048):
    """Return (row_tile, padded_rows).  Prefer large exact divisors (no pad copy);
    otherwise pad n up to a multiple of a large multiple-of-8 tile."""
    if n <= target:
        return n, n                          # one full-extent block (always legal)
    best = 0
    for cand in range(min(target, n), 7, -1):
        if cand % 8 == 0 and n % cand == 0:
            best = cand
            break
    if best >= max(256, target // 4):
        return best, n
    tile = (target // 8) * 8
    return tile, ((n + tile - 1) // tile) * tile


def _pad_rows(x, padded):
    if x.shape[0] == padded:
        return x
    pad = [(0, padded - x.shape[0])] + [(0, 0)] * (x.ndim - 1)
    return jnp.pad(x, pad)


# ----------------------------- Pallas kernels ------------------------------

def _embed_pe_kernel(x_ref, pe_ref, o_ref, *, scale):
    """o = x * sqrt(d_model) + pe   (x:[S,D] bf16, pe:[S,D] f32)."""
    x = x_ref[...].astype(jnp.float32) * scale
    o_ref[...] = (x + pe_ref[...]).astype(o_ref.dtype)


def _linear_kernel(x_ref, w_ref, b_ref, o_ref, *, act):
    """y = act(x @ w + b); x:[tn,In] bf16, w:[In,Out] bf16, b:[1,Out] f32."""
    y = jnp.dot(x_ref[...], w_ref[...], preferred_element_type=jnp.float32)
    y = y + b_ref[...]
    if act == "relu":
        y = jnp.maximum(y, 0.0)
    elif act == "sigmoid":
        y = 1.0 / (1.0 + jnp.exp(-y))
    o_ref[...] = y.astype(o_ref.dtype)


def _attn_kernel(q_ref, kv_ref, o_ref, m_sc, l_sc, acc_sc, *, nheads, dh, scale):
    """Flash-style attention for one batch, all heads; KV tiled over grid axis 1.

    q_ref : [S, 3D]  (only the first D columns -- Q -- are used)
    kv_ref: [Tk, 3D] (columns [D:2D] = K tile, [2D:3D] = V tile)
    o_ref : [S, D]   written lane-dense on the last KV step
    scratch: m/l [H,S,1] f32, acc [S,D] f32
    """
    j = pl.program_id(1)
    d = nheads * dh

    @pl.when(j == 0)
    def _():
        m_sc[...] = jnp.full(m_sc.shape, -jnp.inf, jnp.float32)
        l_sc[...] = jnp.zeros(l_sc.shape, jnp.float32)
        acc_sc[...] = jnp.zeros(acc_sc.shape, jnp.float32)

    for h in range(nheads):
        lo, hi = h * dh, (h + 1) * dh
        q = q_ref[:, lo:hi]                          # [S, Dh]  bf16
        k = kv_ref[:, d + lo:d + hi]                 # [Tk, Dh] bf16
        v = kv_ref[:, 2 * d + lo:2 * d + hi]         # [Tk, Dh] bf16
        s = lax.dot_general(q, k, (((1,), (1,)), ((), ())),
                            preferred_element_type=jnp.float32) * scale   # [S,Tk]
        m_prev = m_sc[h]                             # [S, 1]
        m_new = jnp.maximum(m_prev, jnp.max(s, axis=-1, keepdims=True))
        alpha = jnp.exp(m_prev - m_new)
        p = jnp.exp(s - m_new)
        l_sc[h] = alpha * l_sc[h] + jnp.sum(p, axis=-1, keepdims=True)
        acc_sc[:, lo:hi] = alpha * acc_sc[:, lo:hi] + jnp.dot(
            p.astype(v.dtype), v, preferred_element_type=jnp.float32)
        m_sc[h] = m_new

    @pl.when(j == pl.num_programs(1) - 1)
    def _():
        for h in range(nheads):
            lo, hi = h * dh, (h + 1) * dh
            acc_sc[:, lo:hi] = acc_sc[:, lo:hi] / l_sc[h]   # exact normalization
        o_ref[...] = acc_sc[...].astype(o_ref.dtype)        # one dense store


def _outproj_add_ln_kernel(a_ref, r_ref, w_ref, b_ref, g_ref, bb_ref, o_ref, *, eps):
    """z = LayerNorm(residual + attn_concat @ W_out + b_out).
    a/r:[tn,D] bf16, w:[D,D] bf16, b/g/bb:[1,D] f32."""
    y = jnp.dot(a_ref[...], w_ref[...], preferred_element_type=jnp.float32)
    z = r_ref[...].astype(jnp.float32) + y + b_ref[...]
    mu = jnp.mean(z, axis=-1, keepdims=True)
    dlt = z - mu
    var = jnp.mean(dlt * dlt, axis=-1, keepdims=True)
    o_ref[...] = (dlt * lax.rsqrt(var + eps) * g_ref[...] + bb_ref[...]).astype(o_ref.dtype)


def _ffn_add_ln_kernel(x_ref, w1_ref, b1_ref, w2_ref, b2_ref, g_ref, bb_ref,
                       o_ref, *, eps):
    """z = LayerNorm(x + relu(x@W1+b1)@W2 + b2); intermediate stays on-chip."""
    x = x_ref[...]
    h = jnp.dot(x, w1_ref[...], preferred_element_type=jnp.float32) + b1_ref[...]
    h = jnp.maximum(h, 0.0).astype(w2_ref.dtype)
    y = jnp.dot(h, w2_ref[...], preferred_element_type=jnp.float32) + b2_ref[...]
    z = x.astype(jnp.float32) + y
    mu = jnp.mean(z, axis=-1, keepdims=True)
    dlt = z - mu
    var = jnp.mean(dlt * dlt, axis=-1, keepdims=True)
    o_ref[...] = (dlt * lax.rsqrt(var + eps) * g_ref[...] + bb_ref[...]).astype(o_ref.dtype)


def _maxpool_kernel(x_ref, o_ref):
    """x:[Sp, pool, D] -> max over the pool window -> o:[Sp, D]."""
    o_ref[...] = jnp.max(x_ref[...], axis=1)


def _head_kernel(x_ref, w1_ref, b1_ref, w2_ref, b2_ref, o_ref):
    """Fused decoder head: sigmoid(relu(x@W1+b1)@W2 + b2)."""
    h = jnp.dot(x_ref[...], w1_ref[...], preferred_element_type=jnp.float32) + b1_ref[...]
    h = jnp.maximum(h, 0.0).astype(w2_ref.dtype)
    y = jnp.dot(h, w2_ref[...], preferred_element_type=jnp.float32) + b2_ref[...]
    o_ref[...] = (1.0 / (1.0 + jnp.exp(-y))).astype(o_ref.dtype)


# ------------------------------ kernel wrappers -----------------------------

def embed_pe(emb, pe, d_model):
    """emb:[B,S,D] bf16, pe:[S,D] f32 -> [B,S,D] bf16 (fused scale + PE add)."""
    B, S, D = emb.shape
    return pl.pallas_call(
        functools.partial(_embed_pe_kernel, scale=math.sqrt(d_model)),
        out_shape=jax.ShapeDtypeStruct((B, S, D), emb.dtype),
        grid=(B,),
        in_specs=[pl.BlockSpec((None, S, D), lambda b: (b, 0, 0)),
                  pl.BlockSpec((S, D), lambda b: (0, 0))],
        out_specs=pl.BlockSpec((None, S, D), lambda b: (b, 0, 0)),
        compiler_params=_cparams("parallel"),
    )(emb, pe)


def linear(x, w, b, act="none", out_dtype=None, row_target=2048):
    """Row-tiled y = act(x @ w + b). Used for the QKV projection."""
    N, In = x.shape
    Out = w.shape[1]
    tile, padded = _row_plan(N, row_target)
    xp = _pad_rows(x, padded)
    out_dtype = out_dtype or x.dtype
    y = pl.pallas_call(
        functools.partial(_linear_kernel, act=act),
        out_shape=jax.ShapeDtypeStruct((padded, Out), out_dtype),
        grid=(padded // tile,),
        in_specs=[pl.BlockSpec((tile, In), lambda i: (i, 0)),
                  pl.BlockSpec((In, Out), lambda i: (0, 0)),
                  pl.BlockSpec((1, Out), lambda i: (0, 0))],
        out_specs=pl.BlockSpec((tile, Out), lambda i: (i, 0)),
        compiler_params=_cparams("parallel"),
    )(xp, w, b.reshape(1, Out))
    return y[:N] if padded != N else y


def attention(qkv, B, S, H, Dh, kv_target=512):
    """qkv:[B*S, 3D] (batch-major rows) -> attention output [B*S, D] (lane-concat heads)."""
    D = H * Dh
    q3 = qkv.reshape(B, S, 3 * D)                       # free view
    tk = _divisor_tile(S, kv_target, 8)
    nkv = S // tk
    out = pl.pallas_call(
        functools.partial(_attn_kernel, nheads=H, dh=Dh, scale=1.0 / math.sqrt(Dh)),
        out_shape=jax.ShapeDtypeStruct((B, S, D), qkv.dtype),
        grid=(B, nkv),
        in_specs=[
            pl.BlockSpec((None, S, 3 * D), lambda b, j: (b, 0, 0)),   # Q (full S, resident)
            pl.BlockSpec((None, tk, 3 * D), lambda b, j: (b, j, 0)),  # K/V tile
        ],
        out_specs=pl.BlockSpec((None, S, D), lambda b, j: (b, 0, 0)),
        scratch_shapes=[pltpu.VMEM((H, S, 1), jnp.float32),           # running max
                        pltpu.VMEM((H, S, 1), jnp.float32),           # running sum
                        pltpu.VMEM((S, D), jnp.float32)],             # output acc
        compiler_params=_cparams("parallel", "arbitrary", vmem_mb=32),
    )(q3, q3)
    return out.reshape(B * S, D)


def outproj_add_ln(attn, res, w, b, g, beta, eps=1e-5, row_target=2048):
    """Fused attention out-projection + residual + LayerNorm1."""
    N, D = res.shape
    tile, padded = _row_plan(N, row_target)
    a = _pad_rows(attn, padded)
    r = _pad_rows(res, padded)
    y = pl.pallas_call(
        functools.partial(_outproj_add_ln_kernel, eps=eps),
        out_shape=jax.ShapeDtypeStruct((padded, D), res.dtype),
        grid=(padded // tile,),
        in_specs=[pl.BlockSpec((tile, D), lambda i: (i, 0)),
                  pl.BlockSpec((tile, D), lambda i: (i, 0)),
                  pl.BlockSpec((D, D), lambda i: (0, 0)),
                  pl.BlockSpec((1, D), lambda i: (0, 0)),
                  pl.BlockSpec((1, D), lambda i: (0, 0)),
                  pl.BlockSpec((1, D), lambda i: (0, 0))],
        out_specs=pl.BlockSpec((tile, D), lambda i: (i, 0)),
        compiler_params=_cparams("parallel"),
    )(a, r, w, b.reshape(1, D), g.reshape(1, D), beta.reshape(1, D))
    return y[:N] if padded != N else y


def ffn_add_ln(x, w1, b1, w2, b2, g, beta, eps=1e-5, row_target=2048):
    """Fused FFN (W1+ReLU+W2) + residual + LayerNorm2."""
    N, D = x.shape
    F = w1.shape[1]
    tile, padded = _row_plan(N, row_target)
    xp = _pad_rows(x, padded)
    y = pl.pallas_call(
        functools.partial(_ffn_add_ln_kernel, eps=eps),
        out_shape=jax.ShapeDtypeStruct((padded, D), x.dtype),
        grid=(padded // tile,),
        in_specs=[pl.BlockSpec((tile, D), lambda i: (i, 0)),
                  pl.BlockSpec((D, F), lambda i: (0, 0)),
                  pl.BlockSpec((1, F), lambda i: (0, 0)),
                  pl.BlockSpec((F, D), lambda i: (0, 0)),
                  pl.BlockSpec((1, D), lambda i: (0, 0)),
                  pl.BlockSpec((1, D), lambda i: (0, 0)),
                  pl.BlockSpec((1, D), lambda i: (0, 0))],
        out_specs=pl.BlockSpec((tile, D), lambda i: (i, 0)),
        compiler_params=_cparams("parallel"),
    )(xp, w1, b1.reshape(1, F), w2, b2.reshape(1, D),
      g.reshape(1, D), beta.reshape(1, D))
    return y[:N] if padded != N else y


def maxpool_seq(x, pool):
    """x:[B,S,D] -> max-pool (kernel=stride=pool) over S -> [B,S//pool,D]."""
    B, S, D = x.shape
    Sp = S // pool
    x4 = x.reshape(B, Sp, pool, D)                  # free view
    return pl.pallas_call(
        _maxpool_kernel,
        out_shape=jax.ShapeDtypeStruct((B, Sp, D), x.dtype),
        grid=(B,),
        in_specs=[pl.BlockSpec((None, Sp, pool, D), lambda b: (b, 0, 0, 0))],
        out_specs=pl.BlockSpec((None, Sp, D), lambda b: (b, 0, 0)),
        compiler_params=_cparams("parallel"),
    )(x4)


def decoder_head(flat, w1, b1, w2, b2, row_target=512):
    """Fused decoder Linear+ReLU and output Linear+Sigmoid. flat:[B, Sp*D] bf16."""
    B, In = flat.shape
    F = w1.shape[1]
    G = w2.shape[1]
    tile, padded = _row_plan(B, row_target)
    xp = _pad_rows(flat, padded)
    y = pl.pallas_call(
        _head_kernel,
        out_shape=jax.ShapeDtypeStruct((padded, G), jnp.float32),
        grid=(padded // tile,),
        in_specs=[pl.BlockSpec((tile, In), lambda i: (i, 0)),
                  pl.BlockSpec((In, F), lambda i: (0, 0)),
                  pl.BlockSpec((1, F), lambda i: (0, 0)),
                  pl.BlockSpec((F, G), lambda i: (0, 0)),
                  pl.BlockSpec((1, G), lambda i: (0, 0))],
        out_specs=pl.BlockSpec((tile, G), lambda i: (i, 0)),
        compiler_params=_cparams("parallel"),
    )(xp, w1, b1.reshape(1, F), w2, b2.reshape(1, G))
    return y[:B] if padded != B else y


# --------------------------------- model ------------------------------------

def encoder_layer(x2d, p, S, B, H, Dh):
    """Post-norm TransformerEncoderLayer (torch defaults, ReLU). x2d:[B*S, D]."""
    qkv = linear(x2d, p["w_qkv"], p["b_qkv"])                    # [N, 3D]
    attn = attention(qkv, B, S, H, Dh)                           # [N, D]
    x1 = outproj_add_ln(attn, x2d, p["w_out"], p["b_out"],
                        p["ln1_g"], p["ln1_b"])                  # [N, D]
    x2 = ffn_add_ln(x1, p["ffn_w1"], p["ffn_b1"], p["ffn_w2"], p["ffn_b2"],
                    p["ln2_g"], p["ln2_b"])                      # [N, D]
    return x2


def forward(src, params, cfg):
    """src: int32 [S, B] -> sigmoid output [B, ngos]."""
    S, B = src.shape
    D, H, P = cfg["d_model"], cfg["nhead"], cfg["pool"]
    Dh = D // H

    # embedding lookup (XLA gather), batch-major from the start.
    emb = jnp.take(params["embedding"], src.T, axis=0)           # [B, S, D]
    x = embed_pe(emb, params["pe"][:S], D)                       # [B, S, D]
    # dropout (p=0.5) is identity in eval-mode forward semantics.

    x2d = x.reshape(B * S, D)                                    # batch-major token rows
    for lp in params["layers"]:
        x2d = encoder_layer(x2d, lp, S, B, H, Dh)

    x3 = x2d.reshape(B, S, D)
    Sp = S // P
    pooled = maxpool_seq(x3[:, :Sp * P], P)                      # [B, Sp, D]
    # dec_w is stored s-major ([Sp*D, F]) so the torch d-major flatten + matmul
    # reduces to a free reshape here (permute torch weights once when porting).
    flat = pooled.reshape(B, Sp * D)
    out = decoder_head(flat, params["dec_w"], params["dec_b"],
                       params["out_w"], params["out_b"])
    return out


# ------------------------------ parameter init ------------------------------

def init_params(key, cfg, seq_len):
    D, F, H = cfg["d_model"], cfg["d_hid"], cfg["nhead"]
    keys = iter(jax.random.split(key, 8 * cfg["nlayers"] + 8))

    def u(shape, r=0.1, dtype=STORE_DTYPE):
        return jax.random.uniform(next(keys), shape, jnp.float32, -r, r).astype(dtype)

    params = {"embedding": u((cfg["ntoken"], D))}

    # positional encoding buffer (deterministic sin/cos), stored [seq_len, D] f32
    pos = jnp.arange(seq_len, dtype=jnp.float32)[:, None]
    div = jnp.exp(jnp.arange(0, D, 2, dtype=jnp.float32) * (-math.log(10000.0) / D))
    pe = jnp.zeros((seq_len, D), jnp.float32)
    pe = pe.at[:, 0::2].set(jnp.sin(pos * div))
    pe = pe.at[:, 1::2].set(jnp.cos(pos * div))
    params["pe"] = pe

    layers = []
    for _ in range(cfg["nlayers"]):
        layers.append({
            # QKV projection, lane-concat: cols [0:D]=Q, [D:2D]=K, [2D:3D]=V,
            # each split per-head in Dh chunks (matches torch's head split).
            "w_qkv": u((D, 3 * D)),
            "b_qkv": u((3 * D,), 0.01, jnp.float32),
            "w_out": u((D, D)),
            "b_out": u((D,), 0.01, jnp.float32),
            "ffn_w1": u((D, F)),
            "ffn_b1": u((F,), 0.01, jnp.float32),
            "ffn_w2": u((F, D)),
            "ffn_b2": u((D,), 0.01, jnp.float32),
            "ln1_g": jnp.ones((D,), jnp.float32),
            "ln1_b": jnp.zeros((D,), jnp.float32),
            "ln2_g": jnp.ones((D,), jnp.float32),
            "ln2_b": jnp.zeros((D,), jnp.float32),
        })
    params["layers"] = layers

    pooled_len = seq_len // cfg["pool"]       # torch hard-codes 250 (seq_len=2000)
    params["dec_w"] = u((pooled_len * D, F))  # s-major rows (see forward comment)
    params["dec_b"] = jnp.zeros((F,), jnp.float32)
    params["out_w"] = u((F, cfg["ngos"]))
    params["out_b"] = jnp.zeros((cfg["ngos"],), jnp.float32)
    return params


# ----------------------------------- main -----------------------------------

if __name__ == "__main__":
    cfg = dict(ntoken=100, ngos=10, nhead=2, nlayers=2,
               d_model=32, d_hid=32, pool=8)
    S, B = 16, 2   # small test shapes; seq must be a multiple of pool=8

    key = jax.random.PRNGKey(0)
    k_src, k_par = jax.random.split(key)
    src = jax.random.randint(k_src, (S, B), 0, cfg["ntoken"], dtype=jnp.int32)
    params = init_params(k_par, cfg, S)

    fwd = jax.jit(functools.partial(forward, cfg=cfg))
    out = jax.block_until_ready(fwd(src, params))

    assert out.shape == (B, cfg["ngos"]), out.shape
    assert bool(jnp.all(jnp.isfinite(out)))
    assert bool(jnp.all((out >= 0.0) & (out <= 1.0)))   # sigmoid range
    print("KERNEL_OK")
</pallas_src>

<mosaic_0001>
module attributes {stable_mosaic.version = 11 : i64} {
  func.func @_linear_kernel(%arg0: i32, %arg1: memref<32x32xbf16, #tpu.memory_space<vmem>>, %arg2: memref<32x96xbf16, #tpu.memory_space<vmem>>, %arg3: memref<1x96xf32, #tpu.memory_space<vmem>>, %arg4: memref<32x96xbf16, #tpu.memory_space<vmem>>) attributes {dimension_semantics = [#tpu.dimension_semantics<parallel>], iteration_bounds = array<i64: 1>, scalar_prefetch = 0 : i64, scratch_operands = 0 : i64, tpu.core_type = #tpu.core_type<tc>, window_params = [{transform_indices = @transform_0, window_bounds = array<i64: 32, 32>}, {pipeline_mode = #tpu.pipeline_mode<synchronous>, transform_indices = @transform_1, window_bounds = array<i64: 32, 96>}, {pipeline_mode = #tpu.pipeline_mode<synchronous>, transform_indices = @transform_2, window_bounds = array<i64: 1, 96>}, {transform_indices = @transform_3, window_bounds = array<i64: 32, 96>}]} {
    %c0 = arith.constant 0 : index
    %c0_0 = arith.constant 0 : index
    %0 = vector.load %arg1[%c0, %c0_0] : memref<32x32xbf16, #tpu.memory_space<vmem>>, vector<32x32xbf16>
    %c0_1 = arith.constant 0 : index
    %c0_2 = arith.constant 0 : index
    %1 = vector.load %arg2[%c0_1, %c0_2] : memref<32x96xbf16, #tpu.memory_space<vmem>>, vector<32x96xbf16>
    %cst = arith.constant dense<0.000000e+00> : vector<32x96xf32>
    %2 = tpu.matmul %0, %1, %cst {dimension_numbers = #tpu.dot_dimension_numbers<[1], [0], [0], [1], [0, 0, 1, 1], [], []>} : vector<32x32xbf16>, vector<32x96xbf16>, vector<32x96xf32> -> vector<32x96xf32>
    %c0_3 = arith.constant 0 : index
    %c0_4 = arith.constant 0 : index
    %3 = vector.load %arg3[%c0_3, %c0_4] : memref<1x96xf32, #tpu.memory_space<vmem>>, vector<1x96xf32>
    %4 = vector.broadcast %3 : vector<1x96xf32> to vector<32x96xf32>
    %5 = arith.addf %2, %4 : vector<32x96xf32>
    %6 = arith.truncf %5 : vector<32x96xf32> to vector<32x96xbf16>
    %c0_5 = arith.constant 0 : index
    %c0_6 = arith.constant 0 : index
    %7 = vector.load %arg4[%c0_5, %c0_6] : memref<32x96xbf16, #tpu.memory_space<vmem>>, vector<32x96xbf16>
    tpu.vector_store %arg4[%c0_5, %c0_6], %6 {strides = array<i32>} : memref<32x96xbf16, #tpu.memory_space<vmem>>, vector<32x96xbf16>,
    return
  }
  func.func @transform_0(%arg0: i32) -> (i32, i32) {
    %c0_i32 = arith.constant 0 : i32
    %c0_i32_0 = arith.constant 0 : i32
    return %arg0, %c0_i32 : i32, i32
  }
  func.func @transform_1(%arg0: i32) -> (i32, i32) {
    %c0_i32 = arith.constant 0 : i32
    %c0_i32_0 = arith.constant 0 : i32
    %c0_i32_1 = arith.constant 0 : i32
    return %c0_i32, %c0_i32_0 : i32, i32
  }
  func.func @transform_2(%arg0: i32) -> (i32, i32) {
    %c0_i32 = arith.constant 0 : i32
    %c0_i32_0 = arith.constant 0 : i32
    %c0_i32_1 = arith.constant 0 : i32
    return %c0_i32, %c0_i32_0 : i32, i32
  }
  func.func @transform_3(%arg0: i32) -> (i32, i32) {
    %c0_i32 = arith.constant 0 : i32
    %c0_i32_0 = arith.constant 0 : i32
    return %arg0, %c0_i32 : i32, i32
  }
}

module attributes {stable_mosaic.version = 11 : i64} {
  func.func @_embed_pe_kernel(%arg0: i32, %arg1: memref<1x16x32xbf16, #tpu.memory_space<vmem>>, %arg2: memref<16x32xf32, #tpu.memory_space<vmem>>, %arg3: memref<1x16x32xbf16, #tpu.memory_space<vmem>>) attributes {dimension_semantics = [#tpu.dimension_semantics<parallel>], iteration_bounds = array<i64: 2>, scalar_prefetch = 0 : i64, scratch_operands = 0 : i64, tpu.core_type = #tpu.core_type<tc>, window_params = [{transform_indices = @transform_0, window_bounds = array<i64: 1, 16, 32>}, {pipeline_mode = #tpu.pipeline_mode<synchronous>, transform_indices = @transform_1, window_bounds = array<i64: 16, 32>}, {transform_indices = @transform_2, window_bounds = array<i64: 1, 16, 32>}]} {
    %c0 = arith.constant 0 : index
    %c0_0 = arith.constant 0 : index
    %c0_1 = arith.constant 0 : index
    %0 = vector.load %arg1[%c0, %c0_0, %c0_1] : memref<1x16x32xbf16, #tpu.memory_space<vmem>>, vector<1x16x32xbf16>
    %1 = vector.shape_cast %0 : vector<1x16x32xbf16> to vector<16x32xbf16>
    %2 = arith.extf %1 : vector<16x32xbf16> to vector<16x32xf32>
    %cst = arith.constant 5.65685415 : f32
    %3 = vector.broadcast %cst : f32 to vector<16x32xf32>
    %4 = arith.mulf %2, %3 : vector<16x32xf32>
    %c0_2 = arith.constant 0 : index
    %c0_3 = arith.constant 0 : index
    %5 = vector.load %arg2[%c0_2, %c0_3] : memref<16x32xf32, #tpu.memory_space<vmem>>, vector<16x32xf32>
    %6 = arith.addf %4, %5 : vector<16x32xf32>
    %7 = arith.truncf %6 : vector<16x32xf32> to vector<16x32xbf16>
    %c0_4 = arith.constant 0 : index
    %c0_5 = arith.constant 0 : index
    %c0_6 = arith.constant 0 : index
    %8 = vector.load %arg3[%c0_4, %c0_5, %c0_6] : memref<1x16x32xbf16, #tpu.memory_space<vmem>>, vector<1x16x32xbf16>
    %9 = vector.shape_cast %8 : vector<1x16x32xbf16> to vector<16x32xbf16>
    %10 = vector.shape_cast %7 : vector<16x32xbf16> to vector<1x16x32xbf16>
    tpu.vector_store %arg3[%c0_4, %c0_5, %c0_6], %10 {strides = array<i32>} : memref<1x16x32xbf16, #tpu.memory_space<vmem>>, vector<1x16x32xbf16>,
    return
  }
  func.func @transform_0(%arg0: i32) -> (i32, i32, i32) {
    %c0_i32 = arith.constant 0 : i32
    %c0_i32_0 = arith.constant 0 : i32
    %c0_i32_1 = arith.constant 0 : i32
    return %arg0, %c0_i32, %c0_i32_0 : i32, i32, i32
  }
  func.func @transform_1(%arg0: i32) -> (i32, i32) {
    %c0_i32 = arith.constant 0 : i32
    %c0_i32_0 = arith.constant 0 : i32
    %c0_i32_1 = arith.constant 0 : i32
    return %c0_i32, %c0_i32_0 : i32, i32
  }
  func.func @transform_2(%arg0: i32) -> (i32, i32, i32) {
    %c0_i32 = arith.constant 0 : i32
    %c0_i32_0 = arith.constant 0 : i32
    %c0_i32_1 = arith.constant 0 : i32
    return %arg0, %c0_i32, %c0_i32_0 : i32, i32, i32
  }
}

module attributes {stable_mosaic.version = 11 : i64} {
  func.func @_attn_kernel(%arg0: i32, %arg1: i32, %arg2: memref<1x16x96xbf16, #tpu.memory_space<vmem>>, %arg3: memref<1x16x96xbf16, #tpu.memory_space<vmem>>, %arg4: memref<1x16x32xbf16, #tpu.memory_space<vmem>>, %arg5: memref<2x16x1xf32, #tpu.memory_space<vmem>>, %arg6: memref<2x16x1xf32, #tpu.memory_space<vmem>>, %arg7: memref<16x32xf32, #tpu.memory_space<vmem>>) attributes {dimension_semantics = [#tpu.dimension_semantics<parallel>, #tpu.dimension_semantics<arbitrary>], iteration_bounds = array<i64: 2, 1>, scalar_prefetch = 0 : i64, scratch_operands = 3 : i64, tpu.core_type = #tpu.core_type<tc>, window_params = [{transform_indices = @transform_0, window_bounds = array<i64: 1, 16, 96>}, {transform_indices = @transform_1, window_bounds = array<i64: 1, 16, 96>}, {transform_indices = @transform_2, window_bounds = array<i64: 1, 16, 32>}]} {
    %c0_i32 = arith.constant 0 : i32
    %0 = arith.cmpi eq, %arg1, %c0_i32 : i32
    %1 = arith.extui %0 : i1 to i32
    %c0_i32_0 = arith.constant 0 : i32
    %2 = arith.cmpi ne, %1, %c0_i32_0 : i32
    scf.if %2 {
      %cst_55 = arith.constant 0xFF800000 : f32
      %82 = vector.broadcast %cst_55 : f32 to vector<2x16x1xf32>
      %c0_56 = arith.constant 0 : index
      %c0_57 = arith.constant 0 : index
      %c0_58 = arith.constant 0 : index
      %83 = vector.load %arg5[%c0_56, %c0_57, %c0_58] : memref<2x16x1xf32, #tpu.memory_space<vmem>>, vector<2x16x1xf32>
      tpu.vector_store %arg5[%c0_56, %c0_57, %c0_58], %82 {strides = array<i32>} : memref<2x16x1xf32, #tpu.memory_space<vmem>>, vector<2x16x1xf32>,
      %cst_59 = arith.constant 0.000000e+00 : f32
      %84 = vector.broadcast %cst_59 : f32 to vector<2x16x1xf32>
      %c0_60 = arith.constant 0 : index
      %c0_61 = arith.constant 0 : index
      %c0_62 = arith.constant 0 : index
      %85 = vector.load %arg6[%c0_60, %c0_61, %c0_62] : memref<2x16x1xf32, #tpu.memory_space<vmem>>, vector<2x16x1xf32>
      tpu.vector_store %arg6[%c0_60, %c0_61, %c0_62], %84 {strides = array<i32>} : memref<2x16x1xf32, #tpu.memory_space<vmem>>, vector<2x16x1xf32>,
      %cst_63 = arith.constant 0.000000e+00 : f32
      %86 = vector.broadcast %cst_63 : f32 to vector<16x32xf32>
      %c0_64 = arith.constant 0 : index
      %c0_65 = arith.constant 0 : index
      %87 = vector.load %arg7[%c0_64, %c0_65] : memref<16x32xf32, #tpu.memory_space<vmem>>, vector<16x32xf32>
      tpu.vector_store %arg7[%c0_64, %c0_65], %86 {strides = array<i32>} : memref<16x32xf32, #tpu.memory_space<vmem>>, vector<16x32xf32>,
    } else {
    }
    %c0 = arith.constant 0 : index
    %c0_1 = arith.constant 0 : index
    %c0_2 = arith.constant 0 : index
    %3 = vector.load %arg2[%c0, %c0_1, %c0_2] : memref<1x16x96xbf16, #tpu.memory_space<vmem>>, vector<1x16x16xbf16>
    %4 = vector.shape_cast %3 : vector<1x16x16xbf16> to vector<16x16xbf16>
    %c0_3 = arith.constant 0 : index
    %c0_4 = arith.constant 0 : index
    %c32 = arith.constant 32 : index
    %5 = vector.load %arg3[%c0_3, %c0_4, %c32] : memref<1x16x96xbf16, #tpu.memory_space<vmem>>, vector<1x16x16xbf16>
    %6 = vector.shape_cast %5 : vector<1x16x16xbf16> to vector<16x16xbf16>
    %c0_5 = arith.constant 0 : index
    %c0_6 = arith.constant 0 : index
    %c64 = arith.constant 64 : index
    %7 = vector.load %arg3[%c0_5, %c0_6, %c64] : memref<1x16x96xbf16, #tpu.memory_space<vmem>>, vector<1x16x16xbf16>
    %8 = vector.shape_cast %7 : vector<1x16x16xbf16> to vector<16x16xbf16>
    %cst = arith.constant dense<0.000000e+00> : vector<16x16xf32>
    %9 = tpu.matmul %4, %6, %cst {dimension_numbers = #tpu.dot_dimension_numbers<[1], [1], [0], [0], [0, 0, 1, 0], [], []>} : vector<16x16xbf16>, vector<16x16xbf16>, vector<16x16xf32> -> vector<16x16xf32>
    %cst_7 = arith.constant 2.500000e-01 : f32
    %10 = vector.broadcast %cst_7 : f32 to vector<16x16xf32>
    %11 = arith.mulf %9, %10 : vector<16x16xf32>
    %c0_8 = arith.constant 0 : index
    %c0_9 = arith.constant 0 : index
    %c0_10 = arith.constant 0 : index
    %12 = vector.load %arg5[%c0_8, %c0_9, %c0_10] : memref<2x16x1xf32, #tpu.memory_space<vmem>>, vector<1x16x1xf32>
    %13 = vector.shape_cast %12 : vector<1x16x1xf32> to vector<16x1xf32>
    %cst_11 = arith.constant dense<0xFF800000> : vector<16xf32>
    %14 = vector.multi_reduction <maximumf>, %11, %cst_11 [1] : vector<16x16xf32> to vector<16xf32>
    %15 = vector.shape_cast %14 : vector<16xf32> to vector<16x1xf32>
    %16 = arith.maximumf %13, %15 : vector<16x1xf32>
    %17 = arith.subf %13, %16 : vector<16x1xf32>
    %18 = math.exp %17 : vector<16x1xf32>
    %19 = vector.broadcast %16 : vector<16x1xf32> to vector<16x16xf32>
    %20 = arith.subf %11, %19 : vector<16x16xf32>
    %21 = math.exp %20 : vector<16x16xf32>
    %c0_12 = arith.constant 0 : index
    %c0_13 = arith.constant 0 : index
    %c0_14 = arith.constant 0 : index
    %22 = vector.load %arg6[%c0_12, %c0_13, %c0_14] : memref<2x16x1xf32, #tpu.memory_space<vmem>>, vector<1x16x1xf32>
    %23 = vector.shape_cast %22 : vector<1x16x1xf32> to vector<16x1xf32>
    %24 = arith.mulf %18, %23 : vector<16x1xf32>
    %cst_15 = arith.constant dense<0.000000e+00> : vector<16xf32>
    %25 = vector.multi_reduction <add>, %21, %cst_15 [1] : vector<16x16xf32> to vector<16xf32>
    %26 = vector.shape_cast %25 : vector<16xf32> to vector<16x1xf32>
    %27 = arith.addf %24, %26 : vector<16x1xf32>
    %c0_16 = arith.constant 0 : index
    %c0_17 = arith.constant 0 : index
    %c0_18 = arith.constant 0 : index
    %28 = vector.load %arg6[%c0_16, %c0_17, %c0_18] : memref<2x16x1xf32, #tpu.memory_space<vmem>>, vector<1x16x1xf32>
    %29 = vector.shape_cast %28 : vector<1x16x1xf32> to vector<16x1xf32>
    %30 = vector.shape_cast %27 : vector<16x1xf32> to vector<1x16x1xf32>
    tpu.vector_store %arg6[%c0_16, %c0_17, %c0_18], %30 {strides = array<i32>} : memref<2x16x1xf32, #tpu.memory_space<vmem>>, vector<1x16x1xf32>,
    %c0_19 = arith.constant 0 : index
    %c0_20 = arith.constant 0 : index
    %31 = vector.load %arg7[%c0_19, %c0_20] : memref<16x32xf32, #tpu.memory_space<vmem>>, vector<16x16xf32>
    %32 = vector.broadcast %18 : vector<16x1xf32> to vector<16x16xf32>
    %33 = arith.mulf %32, %31 : vector<16x16xf32>
    %34 = arith.truncf %21 : vector<16x16xf32> to vector<16x16xbf16>
    %cst_21 = arith.constant dense<0.000000e+00> : vector<16x16xf32>
    %35 = tpu.matmul %34, %8, %cst_21 {dimension_numbers = #tpu.dot_dimension_numbers<[1], [0], [0], [1], [0, 0, 1, 1], [], []>} : vector<16x16xbf16>, vector<16x16xbf16>, vector<16x16xf32> -> vector<16x16xf32>
    %36 = arith.addf %33, %35 : vector<16x16xf32>
    %c0_22 = arith.constant 0 : index
    %c0_23 = arith.constant 0 : index
    %37 = vector.load %arg7[%c0_22, %c0_23] : memref<16x32xf32, #tpu.memory_space<vmem>>, vector<16x16xf32>
    tpu.vector_store %arg7[%c0_22, %c0_23], %36 {strides = array<i32>} : memref<16x32xf32, #tpu.memory_space<vmem>>, vector<16x16xf32>,
    %c0_24 = arith.constant 0 : index
    %c0_25 = arith.constant 0 : index
    %c0_26 = arith.constant 0 : index
    %38 = vector.load %arg5[%c0_24, %c0_25, %c0_26] : memref<2x16x1xf32, #tpu.memory_space<vmem>>, vector<1x16x1xf32>
    %39 = vector.shape_cast %38 : vector<1x16x1xf32> to vector<16x1xf32>
    %40 = vector.shape_cast %16 : vector<16x1xf32> to vector<1x16x1xf32>
    tpu.vector_store %arg5[%c0_24, %c0_25, %c0_26], %40 {strides = array<i32>} : memref<2x16x1xf32, #tpu.memory_space<vmem>>, vector<1x16x1xf32>,
    %c0_27 = arith.constant 0 : index
    %c0_28 = arith.constant 0 : index
    %c16 = arith.constant 16 : index
    %41 = vector.load %arg2[%c0_27, %c0_28, %c16] : memref<1x16x96xbf16, #tpu.memory_space<vmem>>, vector<1x16x16xbf16>
    %42 = vector.shape_cast %41 : vector<1x16x16xbf16> to vector<16x16xbf16>
    %c0_29 = arith.constant 0 : index
    %c0_30 = arith.constant 0 : index
    %c48 = arith.constant 48 : index
    %43 = vector.load %arg3[%c0_29, %c0_30, %c48] : memref<1x16x96xbf16, #tpu.memory_space<vmem>>, vector<1x16x16xbf16>
    %44 = vector.shape_cast %43 : vector<1x16x16xbf16> to vector<16x16xbf16>
    %c0_31 = arith.constant 0 : index
    %c0_32 = arith.constant 0 : index
    %c80 = arith.constant 80 : index
    %45 = vector.load %arg3[%c0_31, %c0_32, %c80] : memref<1x16x96xbf16, #tpu.memory_space<vmem>>, vector<1x16x16xbf16>
    %46 = vector.shape_cast %45 : vector<1x16x16xbf16> to vector<16x16xbf16>
    %cst_33 = arith.constant dense<0.000000e+00> : vector<16x16xf32>
    %47 = tpu.matmul %42, %44, %cst_33 {dimension_numbers = #tpu.dot_dimension_numbers<[1], [1], [0], [0], [0, 0, 1, 0], [], []>} : vector<16x16xbf16>, vector<16x16xbf16>, vector<16x16xf32> -> vector<16x16xf32>
    %cst_34 = arith.constant 2.500000e-01 : f32
    %48 = vector.broadcast %cst_34 : f32 to vector<16x16xf32>
    %49 = arith.mulf %47, %48 : vector<16x16xf32>
    %c1 = arith.constant 1 : index
    %c0_35 = arith.constant 0 : index
    %c0_36 = arith.constant 0 : index
    %50 = vector.load %arg5[%c1, %c0_35, %c0_36] : memref<2x16x1xf32, #tpu.memory_space<vmem>>, vector<1x16x1xf32>
    %51 = vector.shape_cast %50 : vector<1x16x1xf32> to vector<16x1xf32>
    %cst_37 = arith.constant dense<0xFF800000> : vector<16xf32>
    %52 = vector.multi_reduction <maximumf>, %49, %cst_37 [1] : vector<16x16xf32> to vector<16xf32>
    %53 = vector.shape_cast %52 : vector<16xf32> to vector<16x1xf32>
    %54 = arith.maximumf %51, %53 : vector<16x1xf32>
    %55 = arith.subf %51, %54 : vector<16x1xf32>
    %56 = math.exp %55 : vector<16x1xf32>
    %57 = vector.broadcast %54 : vector<16x1xf32> to vector<16x16xf32>
    %58 = arith.subf %49, %57 : vector<16x16xf32>
    %59 = math.exp %58 : vector<16x16xf32>
    %c1_38 = arith.constant 1 : index
    %c0_39 = arith.constant 0 : index
    %c0_40 = arith.constant 0 : index
    %60 = vector.load %arg6[%c1_38, %c0_39, %c0_40] : memref<2x16x1xf32, #tpu.memory_space<vmem>>, vector<1x16x1xf32>
    %61 = vector.shape_cast %60 : vector<1x16x1xf32> to vector<16x1xf32>
    %62 = arith.mulf %56, %61 : vector<16x1xf32>
    %cst_41 = arith.constant dense<0.000000e+00> : vector<16xf32>
    %63 = vector.multi_reduction <add>, %59, %cst_41 [1] : vector<16x16xf32> to vector<16xf32>
    %64 = vector.shape_cast %63 : vector<16xf32> to vector<16x1xf32>
    %65 = arith.addf %62, %64 : vector<16x1xf32>
    %c1_42 = arith.constant 1 : index
    %c0_43 = arith.constant 0 : index
    %c0_44 = arith.constant 0 : index
    %66 = vector.load %arg6[%c1_42, %c0_43, %c0_44] : memref<2x16x1xf32, #tpu.memory_space<vmem>>, vector<1x16x1xf32>
    %67 = vector.shape_cast %66 : vector<1x16x1xf32> to vector<16x1xf32>
    %68 = vector.shape_cast %65 : vector<16x1xf32> to vector<1x16x1xf32>
    tpu.vector_store %arg6[%c1_42, %c0_43, %c0_44], %68 {strides = array<i32>} : memref<2x16x1xf32, #tpu.memory_space<vmem>>, vector<1x16x1xf32>,
    %c0_45 = arith.constant 0 : index
    %c16_46 = arith.constant 16 : index
    %69 = vector.load %arg7[%c0_45, %c16_46] : memref<16x32xf32, #tpu.memory_space<vmem>>, vector<16x16xf32>
    %70 = vector.broadcast %56 : vector<16x1xf32> to vector<16x16xf32>
    %71 = arith.mulf %70, %69 : vector<16x16xf32>
    %72 = arith.truncf %59 : vector<16x16xf32> to vector<16x16xbf16>
    %cst_47 = arith.constant dense<0.000000e+00> : vector<16x16xf32>
    %73 = tpu.matmul %72, %46, %cst_47 {dimension_numbers = #tpu.dot_dimension_numbers<[1], [0], [0], [1], [0, 0, 1, 1], [], []>} : vector<16x16xbf16>, vector<16x16xbf16>, vector<16x16xf32> -> vector<16x16xf32>
    %74 = arith.addf %71, %73 : vector<16x16xf32>
    %c0_48 = arith.constant 0 : index
    %c16_49 = arith.constant 16 : index
    %75 = vector.load %arg7[%c0_48, %c16_49] : memref<16x32xf32, #tpu.memory_space<vmem>>, vector<16x16xf32>
    tpu.vector_store %arg7[%c0_48, %c16_49], %74 {strides = array<i32>} : memref<16x32xf32, #tpu.memory_space<vmem>>, vector<16x16xf32>,
    %c1_50 = arith.constant 1 : index
    %c0_51 = arith.constant 0 : index
    %c0_52 = arith.constant 0 : index
    %76 = vector.load %arg5[%c1_50, %c0_51, %c0_52] : memref<2x16x1xf32, #tpu.memory_space<vmem>>, vector<1x16x1xf32>
    %77 = vector.shape_cast %76 : vector<1x16x1xf32> to vector<16x1xf32>
    %78 = vector.shape_cast %54 : vector<16x1xf32> to vector<1x16x1xf32>
    tpu.vector_store %arg5[%c1_50, %c0_51, %c0_52], %78 {strides = array<i32>} : memref<2x16x1xf32, #tpu.memory_space<vmem>>, vector<1x16x1xf32>,
    %c0_i32_53 = arith.constant 0 : i32
    %79 = arith.cmpi eq, %arg1, %c0_i32_53 : i32
    %80 = arith.extui %79 : i1 to i32
    %c0_i32_54 = arith.constant 0 : i32
    %81 = arith.cmpi ne, %80, %c0_i32_54 : i32
    scf.if %81 {
      %c0_55 = arith.constant 0 : index
      %c0_56 = arith.constant 0 : index
      %82 = vector.load %arg7[%c0_55, %c0_56] : memref<16x32xf32, #tpu.memory_space<vmem>>, vector<16x16xf32>
      %c0_57 = arith.constant 0 : index
      %c0_58 = arith.constant 0 : index
      %c0_59 = arith.constant 0 : index
      %83 = vector.load %arg6[%c0_57, %c0_58, %c0_59] : memref<2x16x1xf32, #tpu.memory_space<vmem>>, vector<1x16x1xf32>
      %84 = vector.shape_cast %83 : vector<1x16x1xf32> to vector<16x1xf32>
      %85 = vector.broadcast %84 : vector<16x1xf32> to vector<16x16xf32>
      %86 = arith.divf %82, %85 : vector<16x16xf32>
      %c0_60 = arith.constant 0 : index
      %c0_61 = arith.constant 0 : index
      %87 = vector.load %arg7[%c0_60, %c0_61] : memref<16x32xf32, #tpu.memory_space<vmem>>, vector<16x16xf32>
      tpu.vector_store %arg7[%c0_60, %c0_61], %86 {strides = array<i32>} : memref<16x32xf32, #tpu.memory_space<vmem>>, vector<16x16xf32>,
      %c0_62 = arith.constant 0 : index
      %c16_63 = arith.constant 16 : index
      %88 = vector.load %arg7[%c0_62, %c16_63] : memref<16x32xf32, #tpu.memory_space<vmem>>, vector<16x16xf32>
      %c1_64 = arith.constant 1 : index
      %c0_65 = arith.constant 0 : index
      %c0_66 = arith.constant 0 : index
      %89 = vector.load %arg6[%c1_64, %c0_65, %c0_66] : memref<2x16x1xf32, #tpu.memory_space<vmem>>, vector<1x16x1xf32>
      %90 = vector.shape_cast %89 : vector<1x16x1xf32> to vector<16x1xf32>
      %91 = vector.broadcast %90 : vector<16x1xf32> to vector<16x16xf32>
      %92 = arith.divf %88, %91 : vector<16x16xf32>
      %c0_67 = arith.constant 0 : index
      %c16_68 = arith.constant 16 : index
      %93 = vector.load %arg7[%c0_67, %c16_68] : memref<16x32xf32, #tpu.memory_space<vmem>>, vector<16x16xf32>
      tpu.vector_store %arg7[%c0_67, %c16_68], %92 {strides = array<i32>} : memref<16x32xf32, #tpu.memory_space<vmem>>, vector<16x16xf32>,
      %c0_69 = arith.constant 0 : index
      %c0_70 = arith.constant 0 : index
      %94 = vector.load %arg7[%c0_69, %c0_70] : memref<16x32xf32, #tpu.memory_space<vmem>>, vector<16x32xf32>
      %95 = arith.truncf %94 : vector<16x32xf32> to vector<16x32xbf16>
      %c0_71 = arith.constant 0 : index
      %c0_72 = arith.constant 0 : index
      %c0_73 = arith.constant 0 : index
      %96 = vector.load %arg4[%c0_71, %c0_72, %c0_73] : memref<1x16x32xbf16, #tpu.memory_space<vmem>>, vector<1x16x32xbf16>
      %97 = vector.shape_cast %96 : vector<1x16x32xbf16> to vector<16x32xbf16>
      %98 = vector.shape_cast %95 : vector<16x32xbf16> to vector<1x16x32xbf16>
      tpu.vector_store %arg4[%c0_71, %c0_72, %c0_73], %98 {strides = array<i32>} : memref<1x16x32xbf16, #tpu.memory_space<vmem>>, vector<1x16x32xbf16>,
    } else {
    }
    return
  }
  func.func @transform_0(%arg0: i32, %arg1: i32) -> (i32, i32, i32) {
    %c0_i32 = arith.constant 0 : i32
    %c0_i32_0 = arith.constant 0 : i32
    %c0_i32_1 = arith.constant 0 : i32
    return %arg0, %c0_i32, %c0_i32_0 : i32, i32, i32
  }
  func.func @transform_1(%arg0: i32, %arg1: i32) -> (i32, i32, i32) {
    %c0_i32 = arith.constant 0 : i32
    %c0_i32_0 = arith.constant 0 : i32
    return %arg0, %arg1, %c0_i32 : i32, i32, i32
  }
  func.func @transform_2(%arg0: i32, %arg1: i32) -> (i32, i32, i32) {
    %c0_i32 = arith.constant 0 : i32
    %c0_i32_0 = arith.constant 0 : i32
    %c0_i32_1 = arith.constant 0 : i32
    return %arg0, %c0_i32, %c0_i32_0 : i32, i32, i32
  }
}

module attributes {stable_mosaic.version = 11 : i64} {
  func.func @_outproj_add_ln_kernel(%arg0: i32, %arg1: memref<32x32xbf16, #tpu.memory_space<vmem>>, %arg2: memref<32x32xbf16, #tpu.memory_space<vmem>>, %arg3: memref<32x32xbf16, #tpu.memory_space<vmem>>, %arg4: memref<1x32xf32, #tpu.memory_space<vmem>>, %arg5: memref<1x32xf32, #tpu.memory_space<vmem>>, %arg6: memref<1x32xf32, #tpu.memory_space<vmem>>, %arg7: memref<32x32xbf16, #tpu.memory_space<vmem>>) attributes {dimension_semantics = [#tpu.dimension_semantics<parallel>], iteration_bounds = array<i64: 1>, scalar_prefetch = 0 : i64, scratch_operands = 0 : i64, tpu.core_type = #tpu.core_type<tc>, window_params = [{transform_indices = @transform_0, window_bounds = array<i64: 32, 32>}, {transform_indices = @transform_1, window_bounds = array<i64: 32, 32>}, {pipeline_mode = #tpu.pipeline_mode<synchronous>, transform_indices = @transform_2, window_bounds = array<i64: 32, 32>}, {pipeline_mode = #tpu.pipeline_mode<synchronous>, transform_indices = @transform_3, window_bounds = array<i64: 1, 32>}, {pipeline_mode = #tpu.pipeline_mode<synchronous>, transform_indices = @transform_4, window_bounds = array<i64: 1, 32>}, {pipeline_mode = #tpu.pipeline_mode<synchronous>, transform_indices = @transform_5, window_bounds = array<i64: 1, 32>}, {transform_indices = @transform_6, window_bounds = array<i64: 32, 32>}]} {
    %c0 = arith.constant 0 : index
    %c0_0 = arith.constant 0 : index
    %0 = vector.load %arg1[%c0, %c0_0] : memref<32x32xbf16, #tpu.memory_space<vmem>>, vector<32x32xbf16>
    %c0_1 = arith.constant 0 : index
    %c0_2 = arith.constant 0 : index
    %1 = vector.load %arg3[%c0_1, %c0_2] : memref<32x32xbf16, #tpu.memory_space<vmem>>, vector<32x32xbf16>
    %cst = arith.constant dense<0.000000e+00> : vector<32x32xf32>
    %2 = tpu.matmul %0, %1, %cst {dimension_numbers = #tpu.dot_dimension_numbers<[1], [0], [0], [1], [0, 0, 1, 1], [], []>} : vector<32x32xbf16>, vector<32x32xbf16>, vector<32x32xf32> -> vector<32x32xf32>
    %c0_3 = arith.constant 0 : index
    %c0_4 = arith.constant 0 : index
    %3 = vector.load %arg2[%c0_3, %c0_4] : memref<32x32xbf16, #tpu.memory_space<vmem>>, vector<32x32xbf16>
    %4 = arith.extf %3 : vector<32x32xbf16> to vector<32x32xf32>
    %5 = arith.addf %4, %2 : vector<32x32xf32>
    %c0_5 = arith.constant 0 : index
    %c0_6 = arith.constant 0 : index
    %6 = vector.load %arg4[%c0_5, %c0_6] : memref<1x32xf32, #tpu.memory_space<vmem>>, vector<1x32xf32>
    %7 = vector.broadcast %6 : vector<1x32xf32> to vector<32x32xf32>
    %8 = arith.addf %5, %7 : vector<32x32xf32>
    %cst_7 = arith.constant dense<0.000000e+00> : vector<32xf32>
    %9 = vector.multi_reduction <add>, %8, %cst_7 [1] : vector<32x32xf32> to vector<32xf32>
    %10 = vector.shape_cast %9 : vector<32xf32> to vector<32x1xf32>
    %cst_8 = arith.constant 3.200000e+01 : f32
    %11 = vector.broadcast %cst_8 : f32 to vector<32x1xf32>
    %12 = arith.divf %10, %11 : vector<32x1xf32>
    %13 = vector.broadcast %12 : vector<32x1xf32> to vector<32x32xf32>
    %14 = arith.subf %8, %13 : vector<32x32xf32>
    %15 = arith.mulf %14, %14 : vector<32x32xf32>
    %cst_9 = arith.constant dense<0.000000e+00> : vector<32xf32>
    %16 = vector.multi_reduction <add>, %15, %cst_9 [1] : vector<32x32xf32> to vector<32xf32>
    %17 = vector.shape_cast %16 : vector<32xf32> to vector<32x1xf32>
    %cst_10 = arith.constant 3.200000e+01 : f32
    %18 = vector.broadcast %cst_10 : f32 to vector<32x1xf32>
    %19 = arith.divf %17, %18 : vector<32x1xf32>
    %cst_11 = arith.constant 9.99999974E-6 : f32
    %20 = vector.broadcast %cst_11 : f32 to vector<32x1xf32>
    %21 = arith.addf %19, %20 : vector<32x1xf32>
    %22 = math.rsqrt %21 : vector<32x1xf32>
    %23 = vector.broadcast %22 : vector<32x1xf32> to vector<32x32xf32>
    %24 = arith.mulf %14, %23 : vector<32x32xf32>
    %c0_12 = arith.constant 0 : index
    %c0_13 = arith.constant 0 : index
    %25 = vector.load %arg5[%c0_12, %c0_13] : memref<1x32xf32, #tpu.memory_space<vmem>>, vector<1x32xf32>
    %26 = vector.broadcast %25 : vector<1x32xf32> to vector<32x32xf32>
    %27 = arith.mulf %24, %26 : vector<32x32xf32>
    %c0_14 = arith.constant 0 : index
    %c0_15 = arith.constant 0 : index
    %28 = vector.load %arg6[%c0_14, %c0_15] : memref<1x32xf32, #tpu.memory_space<vmem>>, vector<1x32xf32>
    %29 = vector.broadcast %28 : vector<1x32xf32> to vector<32x32xf32>
    %30 = arith.addf %27, %29 : vector<32x32xf32>
    %31 = arith.truncf %30 : vector<32x32xf32> to vector<32x32xbf16>
    %c0_16 = arith.constant 0 : index
    %c0_17 = arith.constant 0 : index
    %32 = vector.load %arg7[%c0_16, %c0_17] : memref<32x32xbf16, #tpu.memory_space<vmem>>, vector<32x32xbf16>
    tpu.vector_store %arg7[%c0_16, %c0_17], %31 {strides = array<i32>} : memref<32x32xbf16, #tpu.memory_space<vmem>>, vector<32x32xbf16>,
    return
  }
  func.func @transform_0(%arg0: i32) -> (i32, i32) {
    %c0_i32 = arith.constant 0 : i32
    %c0_i32_0 = arith.constant 0 : i32
    return %arg0, %c0_i32 : i32, i32
  }
  func.func @transform_1(%arg0: i32) -> (i32, i32) {
    %c0_i32 = arith.constant 0 : i32
    %c0_i32_0 = arith.constant 0 : i32
    return %arg0, %c0_i32 : i32, i32
  }
  func.func @transform_2(%arg0: i32) -> (i32, i32) {
    %c0_i32 = arith.constant 0 : i32
    %c0_i32_0 = arith.constant 0 : i32
    %c0_i32_1 = arith.constant 0 : i32
    return %c0_i32, %c0_i32_0 : i32, i32
  }
  func.func @transform_3(%arg0: i32) -> (i32, i32) {
    %c0_i32 = arith.constant 0 : i32
    %c0_i32_0 = arith.constant 0 : i32
    %c0_i32_1 = arith.constant 0 : i32
    return %c0_i32, %c0_i32_0 : i32, i32
  }
  func.func @transform_4(%arg0: i32) -> (i32, i32) {
    %c0_i32 = arith.constant 0 : i32
    %c0_i32_0 = arith.constant 0 : i32
    %c0_i32_1 = arith.constant 0 : i32
    return %c0_i32, %c0_i32_0 : i32, i32
  }
  func.func @transform_5(%arg0: i32) -> (i32, i32) {
    %c0_i32 = arith.constant 0 : i32
    %c0_i32_0 = arith.constant 0 : i32
    %c0_i32_1 = arith.constant 0 : i32
    return %c0_i32, %c0_i32_0 : i32, i32
  }
  func.func @transform_6(%arg0: i32) -> (i32, i32) {
    %c0_i32 = arith.constant 0 : i32
    %c0_i32_0 = arith.constant 0 : i32
    return %arg0, %c0_i32 : i32, i32
  }
}

module attributes {stable_mosaic.version = 11 : i64} {
  func.func @_ffn_add_ln_kernel(%arg0: i32, %arg1: memref<32x32xbf16, #tpu.memory_space<vmem>>, %arg2: memref<32x32xbf16, #tpu.memory_space<vmem>>, %arg3: memref<1x32xf32, #tpu.memory_space<vmem>>, %arg4: memref<32x32xbf16, #tpu.memory_space<vmem>>, %arg5: memref<1x32xf32, #tpu.memory_space<vmem>>, %arg6: memref<1x32xf32, #tpu.memory_space<vmem>>, %arg7: memref<1x32xf32, #tpu.memory_space<vmem>>, %arg8: memref<32x32xbf16, #tpu.memory_space<vmem>>) attributes {dimension_semantics = [#tpu.dimension_semantics<parallel>], iteration_bounds = array<i64: 1>, scalar_prefetch = 0 : i64, scratch_operands = 0 : i64, tpu.core_type = #tpu.core_type<tc>, window_params = [{transform_indices = @transform_0, window_bounds = array<i64: 32, 32>}, {pipeline_mode = #tpu.pipeline_mode<synchronous>, transform_indices = @transform_1, window_bounds = array<i64: 32, 32>}, {pipeline_mode = #tpu.pipeline_mode<synchronous>, transform_indices = @transform_2, window_bounds = array<i64: 1, 32>}, {pipeline_mode = #tpu.pipeline_mode<synchronous>, transform_indices = @transform_3, window_bounds = array<i64: 32, 32>}, {pipeline_mode = #tpu.pipeline_mode<synchronous>, transform_indices = @transform_4, window_bounds = array<i64: 1, 32>}, {pipeline_mode = #tpu.pipeline_mode<synchronous>, transform_indices = @transform_5, window_bounds = array<i64: 1, 32>}, {pipeline_mode = #tpu.pipeline_mode<synchronous>, transform_indices = @transform_6, window_bounds = array<i64: 1, 32>}, {transform_indices = @transform_7, window_bounds = array<i64: 32, 32>}]} {
    %c0 = arith.constant 0 : index
    %c0_0 = arith.constant 0 : index
    %0 = vector.load %arg1[%c0, %c0_0] : memref<32x32xbf16, #tpu.memory_space<vmem>>, vector<32x32xbf16>
    %c0_1 = arith.constant 0 : index
    %c0_2 = arith.constant 0 : index
    %1 = vector.load %arg2[%c0_1, %c0_2] : memref<32x32xbf16, #tpu.memory_space<vmem>>, vector<32x32xbf16>
    %cst = arith.constant dense<0.000000e+00> : vector<32x32xf32>
    %2 = tpu.matmul %0, %1, %cst {dimension_numbers = #tpu.dot_dimension_numbers<[1], [0], [0], [1], [0, 0, 1, 1], [], []>} : vector<32x32xbf16>, vector<32x32xbf16>, vector<32x32xf32> -> vector<32x32xf32>
    %c0_3 = arith.constant 0 : index
    %c0_4 = arith.constant 0 : index
    %3 = vector.load %arg3[%c0_3, %c0_4] : memref<1x32xf32, #tpu.memory_space<vmem>>, vector<1x32xf32>
    %4 = vector.broadcast %3 : vector<1x32xf32> to vector<32x32xf32>
    %5 = arith.addf %2, %4 : vector<32x32xf32>
    %cst_5 = arith.constant 0.000000e+00 : f32
    %6 = vector.broadcast %cst_5 : f32 to vector<32x32xf32>
    %7 = arith.maximumf %5, %6 : vector<32x32xf32>
    %8 = arith.truncf %7 : vector<32x32xf32> to vector<32x32xbf16>
    %c0_6 = arith.constant 0 : index
    %c0_7 = arith.constant 0 : index
    %9 = vector.load %arg4[%c0_6, %c0_7] : memref<32x32xbf16, #tpu.memory_space<vmem>>, vector<32x32xbf16>
    %cst_8 = arith.constant dense<0.000000e+00> : vector<32x32xf32>
    %10 = tpu.matmul %8, %9, %cst_8 {dimension_numbers = #tpu.dot_dimension_numbers<[1], [0], [0], [1], [0, 0, 1, 1], [], []>} : vector<32x32xbf16>, vector<32x32xbf16>, vector<32x32xf32> -> vector<32x32xf32>
    %c0_9 = arith.constant 0 : index
    %c0_10 = arith.constant 0 : index
    %11 = vector.load %arg5[%c0_9, %c0_10] : memref<1x32xf32, #tpu.memory_space<vmem>>, vector<1x32xf32>
    %12 = vector.broadcast %11 : vector<1x32xf32> to vector<32x32xf32>
    %13 = arith.addf %10, %12 : vector<32x32xf32>
    %14 = arith.extf %0 : vector<32x32xbf16> to vector<32x32xf32>
    %15 = arith.addf %14, %13 : vector<32x32xf32>
    %cst_11 = arith.constant dense<0.000000e+00> : vector<32xf32>
    %16 = vector.multi_reduction <add>, %15, %cst_11 [1] : vector<32x32xf32> to vector<32xf32>
    %17 = vector.shape_cast %16 : vector<32xf32> to vector<32x1xf32>
    %cst_12 = arith.constant 3.200000e+01 : f32
    %18 = vector.broadcast %cst_12 : f32 to vector<32x1xf32>
    %19 = arith.divf %17, %18 : vector<32x1xf32>
    %20 = vector.broadcast %19 : vector<32x1xf32> to vector<32x32xf32>
    %21 = arith.subf %15, %20 : vector<32x32xf32>
    %22 = arith.mulf %21, %21 : vector<32x32xf32>
    %cst_13 = arith.constant dense<0.000000e+00> : vector<32xf32>
    %23 = vector.multi_reduction <add>, %22, %cst_13 [1] : vector<32x32xf32> to vector<32xf32>
    %24 = vector.shape_cast %23 : vector<32xf32> to vector<32x1xf32>
    %cst_14 = arith.constant 3.200000e+01 : f32
    %25 = vector.broadcast %cst_14 : f32 to vector<32x1xf32>
    %26 = arith.divf %24, %25 : vector<32x1xf32>
    %cst_15 = arith.constant 9.99999974E-6 : f32
    %27 = vector.broadcast %cst_15 : f32 to vector<32x1xf32>
    %28 = arith.addf %26, %27 : vector<32x1xf32>
    %29 = math.rsqrt %28 : vector<32x1xf32>
    %30 = vector.broadcast %29 : vector<32x1xf32> to vector<32x32xf32>
    %31 = arith.mulf %21, %30 : vector<32x32xf32>
    %c0_16 = arith.constant 0 : index
    %c0_17 = arith.constant 0 : index
    %32 = vector.load %arg6[%c0_16, %c0_17] : memref<1x32xf32, #tpu.memory_space<vmem>>, vector<1x32xf32>
    %33 = vector.broadcast %32 : vector<1x32xf32> to vector<32x32xf32>
    %34 = arith.mulf %31, %33 : vector<32x32xf32>
    %c0_18 = arith.constant 0 : index
    %c0_19 = arith.constant 0 : index
    %35 = vector.load %arg7[%c0_18, %c0_19] : memref<1x32xf32, #tpu.memory_space<vmem>>, vector<1x32xf32>
    %36 = vector.broadcast %35 : vector<1x32xf32> to vector<32x32xf32>
    %37 = arith.addf %34, %36 : vector<32x32xf32>
    %38 = arith.truncf %37 : vector<32x32xf32> to vector<32x32xbf16>
    %c0_20 = arith.constant 0 : index
    %c0_21 = arith.constant 0 : index
    %39 = vector.load %arg8[%c0_20, %c0_21] : memref<32x32xbf16, #tpu.memory_space<vmem>>, vector<32x32xbf16>
    tpu.vector_store %arg8[%c0_20, %c0_21], %38 {strides = array<i32>} : memref<32x32xbf16, #tpu.memory_space<vmem>>, vector<32x32xbf16>,
    return
  }
  func.func @transform_0(%arg0: i32) -> (i32, i32) {
    %c0_i32 = arith.constant 0 : i32
    %c0_i32_0 = arith.constant 0 : i32
    return %arg0, %c0_i32 : i32, i32
  }
  func.func @transform_1(%arg0: i32) -> (i32, i32) {
    %c0_i32 = arith.constant 0 : i32
    %c0_i32_0 = arith.constant 0 : i32
    %c0_i32_1 = arith.constant 0 : i32
    return %c0_i32, %c0_i32_0 : i32, i32
  }
  func.func @transform_2(%arg0: i32) -> (i32, i32) {
    %c0_i32 = arith.constant 0 : i32
    %c0_i32_0 = arith.constant 0 : i32
    %c0_i32_1 = arith.constant 0 : i32
    return %c0_i32, %c0_i32_0 : i32, i32
  }
  func.func @transform_3(%arg0: i32) -> (i32, i32) {
    %c0_i32 = arith.constant 0 : i32
    %c0_i32_0 = arith.constant 0 : i32
    %c0_i32_1 = arith.constant 0 : i32
    return %c0_i32, %c0_i32_0 : i32, i32
  }
  func.func @transform_4(%arg0: i32) -> (i32, i32) {
    %c0_i32 = arith.constant 0 : i32
    %c0_i32_0 = arith.constant 0 : i32
    %c0_i32_1 = arith.constant 0 : i32
    return %c0_i32, %c0_i32_0 : i32, i32
  }
  func.func @transform_5(%arg0: i32) -> (i32, i32) {
    %c0_i32 = arith.constant 0 : i32
    %c0_i32_0 = arith.constant 0 : i32
    %c0_i32_1 = arith.constant 0 : i32
    return %c0_i32, %c0_i32_0 : i32, i32
  }
  func.func @transform_6(%arg0: i32) -> (i32, i32) {
    %c0_i32 = arith.constant 0 : i32
    %c0_i32_0 = arith.constant 0 : i32
    %c0_i32_1 = arith.constant 0 : i32
    return %c0_i32, %c0_i32_0 : i32, i32
  }
  func.func @transform_7(%arg0: i32) -> (i32, i32) {
    %c0_i32 = arith.constant 0 : i32
    %c0_i32_0 = arith.constant 0 : i32
    return %arg0, %c0_i32 : i32, i32
  }
}

module attributes {stable_mosaic.version = 11 : i64} {
  func.func @_maxpool_kernel(%arg0: i32, %arg1: memref<1x2x8x32xbf16, #tpu.memory_space<vmem>>, %arg2: memref<1x2x32xbf16, #tpu.memory_space<vmem>>) attributes {dimension_semantics = [#tpu.dimension_semantics<parallel>], iteration_bounds = array<i64: 2>, scalar_prefetch = 0 : i64, scratch_operands = 0 : i64, tpu.core_type = #tpu.core_type<tc>, window_params = [{transform_indices = @transform_0, window_bounds = array<i64: 1, 2, 8, 32>}, {transform_indices = @transform_1, window_bounds = array<i64: 1, 2, 32>}]} {
    %c0 = arith.constant 0 : index
    %c0_0 = arith.constant 0 : index
    %c0_1 = arith.constant 0 : index
    %c0_2 = arith.constant 0 : index
    %0 = vector.load %arg1[%c0, %c0_0, %c0_1, %c0_2] : memref<1x2x8x32xbf16, #tpu.memory_space<vmem>>, vector<1x2x8x32xbf16>
    %1 = vector.shape_cast %0 : vector<1x2x8x32xbf16> to vector<2x8x32xbf16>
    %cst = arith.constant dense<0xFF80> : vector<2x32xbf16>
    %2 = vector.multi_reduction <maximumf>, %1, %cst [1] : vector<2x8x32xbf16> to vector<2x32xbf16>
    %c0_3 = arith.constant 0 : index
    %c0_4 = arith.constant 0 : index
    %c0_5 = arith.constant 0 : index
    %3 = vector.load %arg2[%c0_3, %c0_4, %c0_5] : memref<1x2x32xbf16, #tpu.memory_space<vmem>>, vector<1x2x32xbf16>
    %4 = vector.shape_cast %3 : vector<1x2x32xbf16> to vector<2x32xbf16>
    %5 = vector.shape_cast %2 : vector<2x32xbf16> to vector<1x2x32xbf16>
    tpu.vector_store %arg2[%c0_3, %c0_4, %c0_5], %5 {strides = array<i32>} : memref<1x2x32xbf16, #tpu.memory_space<vmem>>, vector<1x2x32xbf16>,
    return
  }
  func.func @transform_0(%arg0: i32) -> (i32, i32, i32, i32) {
    %c0_i32 = arith.constant 0 : i32
    %c0_i32_0 = arith.constant 0 : i32
    %c0_i32_1 = arith.constant 0 : i32
    %c0_i32_2 = arith.constant 0 : i32
    return %arg0, %c0_i32, %c0_i32_0, %c0_i32_1 : i32, i32, i32, i32
  }
  func.func @transform_1(%arg0: i32) -> (i32, i32, i32) {
    %c0_i32 = arith.constant 0 : i32
    %c0_i32_0 = arith.constant 0 : i32
    %c0_i32_1 = arith.constant 0 : i32
    return %arg0, %c0_i32, %c0_i32_0 : i32, i32, i32
  }
}

module attributes {stable_mosaic.version = 11 : i64} {
  func.func @_head_kernel(%arg0: i32, %arg1: memref<2x64xbf16, #tpu.memory_space<vmem>>, %arg2: memref<64x32xbf16, #tpu.memory_space<vmem>>, %arg3: memref<1x32xf32, #tpu.memory_space<vmem>>, %arg4: memref<32x10xbf16, #tpu.memory_space<vmem>>, %arg5: memref<1x10xf32, #tpu.memory_space<vmem>>, %arg6: memref<2x10xf32, #tpu.memory_space<vmem>>) attributes {dimension_semantics = [#tpu.dimension_semantics<parallel>], iteration_bounds = array<i64: 1>, scalar_prefetch = 0 : i64, scratch_operands = 0 : i64, tpu.core_type = #tpu.core_type<tc>, window_params = [{transform_indices = @transform_0, window_bounds = array<i64: 2, 64>}, {pipeline_mode = #tpu.pipeline_mode<synchronous>, transform_indices = @transform_1, window_bounds = array<i64: 64, 32>}, {pipeline_mode = #tpu.pipeline_mode<synchronous>, transform_indices = @transform_2, window_bounds = array<i64: 1, 32>}, {pipeline_mode = #tpu.pipeline_mode<synchronous>, transform_indices = @transform_3, window_bounds = array<i64: 32, 10>}, {pipeline_mode = #tpu.pipeline_mode<synchronous>, transform_indices = @transform_4, window_bounds = array<i64: 1, 10>}, {transform_indices = @transform_5, window_bounds = array<i64: 2, 10>}]} {
    %c0 = arith.constant 0 : index
    %c0_0 = arith.constant 0 : index
    %0 = vector.load %arg1[%c0, %c0_0] : memref<2x64xbf16, #tpu.memory_space<vmem>>, vector<2x64xbf16>
    %c0_1 = arith.constant 0 : index
    %c0_2 = arith.constant 0 : index
    %1 = vector.load %arg2[%c0_1, %c0_2] : memref<64x32xbf16, #tpu.memory_space<vmem>>, vector<64x32xbf16>
    %cst = arith.constant dense<0.000000e+00> : vector<2x32xf32>
    %2 = tpu.matmul %0, %1, %cst {dimension_numbers = #tpu.dot_dimension_numbers<[1], [0], [0], [1], [0, 0, 1, 1], [], []>} : vector<2x64xbf16>, vector<64x32xbf16>, vector<2x32xf32> -> vector<2x32xf32>
    %c0_3 = arith.constant 0 : index
    %c0_4 = arith.constant 0 : index
    %3 = vector.load %arg3[%c0_3, %c0_4] : memref<1x32xf32, #tpu.memory_space<vmem>>, vector<1x32xf32>
    %4 = vector.broadcast %3 : vector<1x32xf32> to vector<2x32xf32>
    %5 = arith.addf %2, %4 : vector<2x32xf32>
    %cst_5 = arith.constant 0.000000e+00 : f32
    %6 = vector.broadcast %cst_5 : f32 to vector<2x32xf32>
    %7 = arith.maximumf %5, %6 : vector<2x32xf32>
    %8 = arith.truncf %7 : vector<2x32xf32> to vector<2x32xbf16>
    %c0_6 = arith.constant 0 : index
    %c0_7 = arith.constant 0 : index
    %9 = vector.load %arg4[%c0_6, %c0_7] : memref<32x10xbf16, #tpu.memory_space<vmem>>, vector<32x10xbf16>
    %cst_8 = arith.constant dense<0.000000e+00> : vector<2x10xf32>
    %10 = tpu.matmul %8, %9, %cst_8 {dimension_numbers = #tpu.dot_dimension_numbers<[1], [0], [0], [1], [0, 0, 1, 1], [], []>} : vector<2x32xbf16>, vector<32x10xbf16>, vector<2x10xf32> -> vector<2x10xf32>
    %c0_9 = arith.constant 0 : index
    %c0_10 = arith.constant 0 : index
    %11 = vector.load %arg5[%c0_9, %c0_10] : memref<1x10xf32, #tpu.memory_space<vmem>>, vector<1x10xf32>
    %12 = vector.broadcast %11 : vector<1x10xf32> to vector<2x10xf32>
    %13 = arith.addf %10, %12 : vector<2x10xf32>
    %cst_11 = arith.constant 0.000000e+00 : f32
    %14 = vector.broadcast %cst_11 : f32 to vector<2x10xf32>
    %15 = arith.subf %14, %13 : vector<2x10xf32>
    %16 = math.exp %15 : vector<2x10xf32>
    %cst_12 = arith.constant 1.000000e+00 : f32
    %17 = vector.broadcast %cst_12 : f32 to vector<2x10xf32>
    %18 = arith.addf %17, %16 : vector<2x10xf32>
    %cst_13 = arith.constant 1.000000e+00 : f32
    %19 = vector.broadcast %cst_13 : f32 to vector<2x10xf32>
    %20 = arith.divf %19, %18 : vector<2x10xf32>
    %c0_14 = arith.constant 0 : index
    %c0_15 = arith.constant 0 : index
    %21 = vector.load %arg6[%c0_14, %c0_15] : memref<2x10xf32, #tpu.memory_space<vmem>>, vector<2x10xf32>
    tpu.vector_store %arg6[%c0_14, %c0_15], %20 {strides = array<i32>} : memref<2x10xf32, #tpu.memory_space<vmem>>, vector<2x10xf32>,
    return
  }
  func.func @transform_0(%arg0: i32) -> (i32, i32) {
    %c0_i32 = arith.constant 0 : i32
    %c0_i32_0 = arith.constant 0 : i32
    return %arg0, %c0_i32 : i32, i32
  }
  func.func @transform_1(%arg0: i32) -> (i32, i32) {
    %c0_i32 = arith.constant 0 : i32
    %c0_i32_0 = arith.constant 0 : i32
    %c0_i32_1 = arith.constant 0 : i32
    return %c0_i32, %c0_i32_0 : i32, i32
  }
  func.func @transform_2(%arg0: i32) -> (i32, i32) {
    %c0_i32 = arith.constant 0 : i32
    %c0_i32_0 = arith.constant 0 : i32
    %c0_i32_1 = arith.constant 0 : i32
    return %c0_i32, %c0_i32_0 : i32, i32
  }
  func.func @transform_3(%arg0: i32) -> (i32, i32) {
    %c0_i32 = arith.constant 0 : i32
    %c0_i32_0 = arith.constant 0 : i32
    %c0_i32_1 = arith.constant 0 : i32
    return %c0_i32, %c0_i32_0 : i32, i32
  }
  func.func @transform_4(%arg0: i32) -> (i32, i32) {
    %c0_i32 = arith.constant 0 : i32
    %c0_i32_0 = arith.constant 0 : i32
    %c0_i32_1 = arith.constant 0 : i32
    return %c0_i32, %c0_i32_0 : i32, i32
  }
  func.func @transform_5(%arg0: i32) -> (i32, i32) {
    %c0_i32 = arith.constant 0 : i32
    %c0_i32_0 = arith.constant 0 : i32
    return %arg0, %c0_i32 : i32, i32
  }
}

</mosaic_0001>

<llo_original>
// kernel: forward.11
$region0: #{forward.11}
  #allocation0 [shape = 'u32[]', space=smem, size = 0x4, offset = 0x4, fixed_abs, tag = 'smem constant byte address 0x4 - core index']
  #allocation1 [shape = 'u32[72,128]{1,0:T(1,128)}', space=vmem, size = 0x9000, scoped, tag = 'internal scratch']
  %s0 = inlined_call_operand.vmem [shape: bf16[2,16,32], index: 0, kind: input, shape index: {}]
  %s1 = inlined_call_operand.vmem [shape: f32[16,32], index: 1, kind: input, shape index: {}]
  %s2 = inlined_call_operand.vmem [shape: bf16[2,16,32], index: 2, kind: output, shape index: {}]
  %s3 = sld [smem:[#allocation0]]
  $region41: #{forward.11} parent=0
    _
  %s5 = ssub.s32 1, %s3
  %s6 = scalar_select 0, %s5, %s3
  loop: start=0, step=1, limit=4
  $region2: #{forward.11} parent=0 // loop_pre_header
    _
  $region3: #{forward.11} parent=0 // loop_header
    %s8 = sphi 0, %s12
    %p9 = scmp.ge.s32.totalorder %s8, 4
    %s18 = sphi 0, %s20
    %s21 = sphi 0, %s18
    %s22 = sphi 0, %s21
    %s38 = sphi 0, %s22
    %s42 = sphi 0, %s42
    %s44 = sphi 0, %s42
    %s45 = sphi 0, %s44
    %s59 = sphi 0, %s45
    %s65 = sphi 0, %s67
    %s68 = sphi 0, %s65
    %s69 = sphi 0, %s68
    %s85 = sphi 0, %s69
  $region4: #{forward.11} parent=0 // loop_header_branch
    %11 = sbr.rel (%p9) target = $region8
  $region5: #{forward.11} parent=0 // loop_body
    %s13 = ssub.s32 %s8, 1
    %s14 = ssub.s32 %s8, 2
    %s15 = sadd.s32 %s8, 1
    %s16 = ssub.s32 %s8, %s15
    %p17 = scmp.eq.s32.totalorder %s16, 0
    %s19 = sadd.s32 %s18, 1
    %s20 = scalar_select %p17, %s18, %s19
    %p23 = pneg %p17
    %p24 = scmp.eq.s32.totalorder %s8, 1
    %p25 = por %p23, %p24
    %p26 = scmp.ne.s32.totalorder %s18, %s21
    %p27 = scmp.eq.s32.totalorder %s8, 0
    %p28 = por %p26, %p27
    %p29 = scmp.ne.s32.totalorder %s18, %s21
    %p30 = scmp.eq.s32.totalorder %s13, 1
    %p31 = por %p29, %p30
    %p32 = scmp.ne.s32.totalorder %s21, %s22
    %p33 = scmp.eq.s32.totalorder %s13, 0
    %p34 = por %p32, %p33
    %p35 = scmp.ne.s32.totalorder %s21, %s22
    %p36 = scmp.eq.s32.totalorder %s14, 1
    %p37 = por %p35, %p36
    %p39 = scmp.ne.s32.totalorder %s22, %s38
    %p40 = scmp.eq.s32.totalorder %s14, 0
    %p41 = por %p39, %p40
    %s43 = sadd.s32 %s42, 1
    %p46 = scmp.eq.s32.totalorder %s8, 1
    %p47 = scmp.ne.s32.totalorder %s42, %s44
    %p48 = scmp.eq.s32.totalorder %s8, 0
    %p49 = por %p47, %p48
    %p50 = scmp.ne.s32.totalorder %s42, %s44
    %p51 = scmp.eq.s32.totalorder %s13, 1
    %p52 = por %p50, %p51
    %p53 = scmp.ne.s32.totalorder %s44, %s45
    %p54 = scmp.eq.s32.totalorder %s13, 0
    %p55 = por %p53, %p54
    %p56 = scmp.ne.s32.totalorder %s44, %s45
    %p57 = scmp.eq.s32.totalorder %s14, 1
    %p58 = por %p56, %p57
    %p60 = scmp.ne.s32.totalorder %s45, %s59
    %p61 = scmp.eq.s32.totalorder %s14, 0
    %p62 = por %p60, %p61
    %s63 = ssub.s32 %s8, %s15
    %p64 = scmp.eq.s32.totalorder %s63, 0
    %s66 = sadd.s32 %s65, 1
    %s67 = scalar_select %p64, %s65, %s66
    %p70 = pneg %p64
    %p71 = scmp.eq.s32.totalorder %s8, 1
    %p72 = por %p70, %p71
    %p73 = scmp.ne.s32.totalorder %s65, %s68
    %p74 = scmp.eq.s32.totalorder %s8, 0
    %p75 = por %p73, %p74
    %p76 = scmp.ne.s32.totalorder %s65, %s68
    %p77 = scmp.eq.s32.totalorder %s13, 1
    %p78 = por %p76, %p77
    %p79 = scmp.ne.s32.totalorder %s68, %s69
    %p80 = scmp.eq.s32.totalorder %s13, 0
    %p81 = por %p79, %p80
    %p82 = scmp.ne.s32.totalorder %s68, %s69
    %p83 = scmp.eq.s32.totalorder %s14, 1
    %p84 = por %p82, %p83
    %p86 = scmp.ne.s32.totalorder %s69, %s85
    %p87 = scmp.eq.s32.totalorder %s14, 0
    %p88 = por %p86, %p87
    %p89 = scmp.le.s32.totalorder 1, %s8
    %p90 = scmp.lt.s32.totalorder %s8, 3
    %p91 = pnand %p89, %p90
    %p92 = pneg %p91
    // Predicated region
    $region9: #{forward.11} parent=5 // pred_check
      _
    $region10: #{forward.11} parent=5 // pred_check_branch
      %94 = sbr.rel (%p91) target = $region12
    $region11: #{forward.11} parent=5 // pred_region
      %s95 = ssub.s32 %s8, 1
      // Predicated region
      $region13: #{forward.11} parent=11 // pred_check
        %p96 = pneg %p55
      $region14: #{forward.11} parent=11 // pred_check_branch
        %98 = sbr.rel (%p96) target = $region16
      $region15: #{forward.11} parent=11 // pred_region
        _
      $region16: #{forward.11} parent=11 // pred_fallthru
        _
    $region12: #{forward.11} parent=5 // pred_fallthru
      _
    %p99 = scmp.lt.s32.totalorder %s8, 2
    // Predicated region
    $region17: #{forward.11} parent=5 // pred_check
      %p100 = pneg %p99
    $region18: #{forward.11} parent=5 // pred_check_branch
      %102 = sbr.rel (%p100) target = $region20
    $region19: #{forward.11} parent=5 // pred_region
      // Predicated region
      $region21: #{forward.11} parent=19 // pred_check
        %p103 = pneg %p28
      $region22: #{forward.11} parent=19 // pred_check_branch
        %105 = sbr.rel (%p103) target = $region24
      $region23: #{forward.11} parent=19 // pred_region
        %p106 = scmp.lt.s32.totalorder %s8, 1
        %s107 = scalar_select %p106, %s8, 1
        %s108 = smul.addr %s107, 2
        %s109 = smul.addr %s108, 4
        %s110 = scalar_lea.vmem %s0, %s109
      $region24: #{forward.11} parent=19 // pred_fallthru
        _
    $region20: #{forward.11} parent=5 // pred_fallthru
      _
    %p111 = scmp.le.s32.totalorder 1, %s8
    %p112 = scmp.lt.s32.totalorder %s8, 3
    %p113 = pnand %p111, %p112
    %p114 = pneg %p113
    // Predicated region
    $region25: #{forward.11} parent=5 // pred_check
      _
    $region26: #{forward.11} parent=5 // pred_check_branch
      %116 = sbr.rel (%p113) target = $region28
    $region27: #{forward.11} parent=5 // pred_region
      %s117 = ssub.s32 %s8, 1
      %p118 = scmp.lt.s32.totalorder %s13, 1
      %s119 = scalar_select %p118, %s13, 1
      %s120 = smul.addr %s119, 2
      %s121 = smul.addr %s120, 4
      %s122 = scalar_lea.vmem %s0, %s121
      %p123 = pneg %p34
      %p124 = pneg %p31
      %p125 = pneg %p55
      %p126 = pneg %p52
      %p127 = pneg %p81
      %p128 = pneg %p78
      %p129 = scmp.lt.s32.totalorder %s13, 1
      %s130 = scalar_select %p129, %s13, 1
      %s131 = smul.addr %s130, 2
      %s132 = smul.addr %s131, 4
      %s133 = scalar_lea.vmem %s2, %s132
      %p134 = scmp.lt.s32.totalorder %s13, 1
      %s135 = scalar_select %p134, %s13, 1
      %s136 = smul.addr %s135, 2
      %s137 = smul.addr %s136, 4
      %s138 = scalar_lea.vmem %s0, %s137
      %p139 = scmp.lt.s32.totalorder %s13, 1
      %s140 = scalar_select %p139, %s13, 1
      %s141 = smul.addr %s140, 2
      %s142 = smul.addr %s141, 4
      %s143 = scalar_lea.vmem %s2, %s142
      %v144 = vld [vmem:[%s138] sm:$0xf]
      %v145 = vld [vmem:[%s138 + $0x4] sm:$0xf]
      %v146 = vunpack.c.l.bf16 %v144
      %v147 = vunpack.c.l.bf16 %v145
      %v148 = vmul.f32 %v146, 5.656854
      %v149 = vmul.f32 %v147, 5.656854
      %v150 = vld [vmem:[%s1] sm:$0xff]
      %v151 = vld [vmem:[%s1 + $0x8] sm:$0xff]
      %v152 = vadd.f32 %v148, %v150
      %v153 = vadd.f32 %v149, %v151
      %v154 = vpack.c.bf16 %v152, %v152
      %v155 = vpack.c.bf16 %v153, %v153
      %vm156 = vcmask 257024
      %157 = vst.msk [vmem:[%s143] sm:$0xf] %vm156, %v154
      %158 = vst.msk [vmem:[%s143 + $0x4] sm:$0xf] %vm156, %v155
      %p159 = scmp.lt.s32.totalorder %s13, 1
      %s160 = scalar_select %p159, %s13, 1
      %s161 = smul.addr %s160, 2
      %s162 = smul.addr %s161, 4
      %s163 = scalar_lea.vmem %s2, %s162
      // Predicated region
      $region29: #{forward.11} parent=27 // pred_check
        %p164 = pneg %p78
      $region30: #{forward.11} parent=27 // pred_check_branch
        %166 = sbr.rel (%p164) target = $region32
      $region31: #{forward.11} parent=27 // pred_region
        _
      $region32: #{forward.11} parent=27 // pred_fallthru
        _
    $region28: #{forward.11} parent=5 // pred_fallthru
      _
    %p167 = scmp.le.s32.totalorder 2, %s8
    // Predicated region
    $region33: #{forward.11} parent=5 // pred_check
      %p168 = pneg %p167
    $region34: #{forward.11} parent=5 // pred_check_branch
      %170 = sbr.rel (%p168) target = $region36
    $region35: #{forward.11} parent=5 // pred_region
      %s171 = ssub.s32 %s8, 2
      // Predicated region
      $region37: #{forward.11} parent=35 // pred_check
        %p172 = pneg %p84
      $region38: #{forward.11} parent=35 // pred_check_branch
        %174 = sbr.rel (%p172) target = $region40
      $region39: #{forward.11} parent=35 // pred_region
        %p175 = scmp.lt.s32.totalorder %s14, 1
        %s176 = scalar_select %p175, %s14, 1
        %s177 = smul.addr %s176, 2
        %s178 = smul.addr %s177, 4
        %s179 = scalar_lea.vmem %s2, %s178
      $region40: #{forward.11} parent=35 // pred_fallthru
        _
    $region36: #{forward.11} parent=5 // pred_fallthru
      _
  $region6: #{forward.11} parent=0 // loop_footer
    %s12 = sadd.s32 1, %s8
  $region7: #{forward.11} parent=0 // loop_footer_branch
    %7 = sbr.rel target = $region3
  $region8: #{forward.11} parent=0 // loop_exit
    _

// kernel: forward.12
$region0: #{forward.12}
  #allocation0 [shape = 'u32[]', space=smem, size = 0x4, offset = 0x4, fixed_abs, tag = 'smem constant byte address 0x4 - core index']
  #allocation1 [shape = 'u32[72,128]{1,0:T(1,128)}', space=vmem, size = 0x9000, scoped, tag = 'internal scratch']
  %s0 = inlined_call_operand.vmem [shape: bf16[32,32], index: 0, kind: input, shape index: {}]
  %s1 = inlined_call_operand.vmem [shape: bf16[32,96], index: 1, kind: input, shape index: {}]
  %s2 = inlined_call_operand.vmem [shape: f32[1,96], index: 2, kind: input, shape index: {}]
  %s3 = inlined_call_operand.vmem [shape: bf16[32,96], index: 3, kind: output, shape index: {}]
  %s4 = sld [smem:[#allocation0]]
  $region22: #{forward.12} parent=0
    _
  %s6 = ssub.s32 1, %s4
  %s7 = scalar_select 0, %s6, %s4
  // Predicated region
  $region2: #{forward.12} parent=0 // pred_check
    _
  $region3: #{forward.12} parent=0 // pred_check_branch
    %9 = sbr.rel (0) target = $region5
  $region4: #{forward.12} parent=0 // pred_region
    _
  $region5: #{forward.12} parent=0 // pred_fallthru
    _
  // Predicated region
  $region6: #{forward.12} parent=0 // pred_check
    _
  $region7: #{forward.12} parent=0 // pred_check_branch
    %11 = sbr.rel (0) target = $region9
  $region8: #{forward.12} parent=0 // pred_region
    _
  $region9: #{forward.12} parent=0 // pred_fallthru
    _
  // Predicated region
  $region10: #{forward.12} parent=0 // pred_check
    _
  $region11: #{forward.12} parent=0 // pred_check_branch
    %13 = sbr.rel (0) target = $region13
  $region12: #{forward.12} parent=0 // pred_region
    _
  $region13: #{forward.12} parent=0 // pred_fallthru
    _
  %v15 = vld [vmem:[%s0] sm:$0xf]
  %v16 = vld [vmem:[%s0 + $0x4] sm:$0xf]
  %v17 = vld [vmem:[%s0 + $0x8] sm:$0xf]
  %v18 = vld [vmem:[%s0 + $0xc] sm:$0xf]
  %v19 = vld [vmem:[%s1] sm:$0xf]
  %v20 = vld [vmem:[%s1 + $0x4] sm:$0xf]
  %v21 = vld [vmem:[%s1 + $0x8] sm:$0xf]
  %v22 = vld [vmem:[%s1 + $0xc] sm:$0xf]
  %v23 = vld [vmem:[%s2] sm:$0x1]
  %v25 = vperm.slane %v23, 0
  %v31 = vunpack.c.l.b16 %v15
  %v32 = vunpack.c.l.b16 %v16
  %v33 = vunpack.c.l.b16 %v17
  %v34 = vunpack.c.l.b16 %v18
  %v35 = vpack.c.b16 %v32, %v31
  %v36 = vpack.c.b16 %v34, %v33
  %v41 = vunpack.c.l.b16 %v19
  %v42 = vunpack.c.l.b16 %v20
  %v43 = vunpack.c.l.b16 %v21
  %v44 = vunpack.c.l.b16 %v22
  %v45 = vpack.c.b16 %v42, %v41
  %v46 = vpack.c.b16 %v44, %v43
  %vm49 = vcmask 261120
  %v51 = vsel %vm49, %v35, 0
  %v54 = vsel %vm49, %v36, 0
  %56 = vmatpush.bf16.msra.mxu0 0
  %57 = vmatpush.bf16.msra.mxu0 0
  %58 = vmatpush.bf16.msra.mxu0 0
  %59 = vmatpush.bf16.msra.mxu0 0
  %60 = vmatpush.bf16.msra.mxu0 0
  %61 = vmatpush.bf16.msra.mxu0 0
  %62 = vmatpush.bf16.msra.mxu0 %v46
  %63 = vmatpush.bf16.msra.mxu0 %v45
  %64 = vmatmul.bf16.gmra.mxu0 %v51
  %v65 = vpop.f32.mrf.mxu0
  %v66 = vadd.f32 %v25, %v65
  %v67 = vpop.f32.mrf.mxu0
  %v68 = vadd.f32 %v25, %v67
  %69 = vmatmul.bf16.gmra.mxu0 %v54
  %v70 = vpop.f32.mrf.mxu0
  %v71 = vadd.f32 %v25, %v70
  %v72 = vpop.f32.mrf.mxu0
  %v73 = vadd.f32 %v25, %v72
  %74 = vdwg.mxu0
  %v75 = vpack.c.bf16 %v66, %v66
  %v76 = vpack.c.bf16 %v68, %v68
  %v77 = vpack.c.bf16 %v71, %v71
  %v78 = vpack.c.bf16 %v73, %v73
  %vm79 = vcmask 781312
  %80 = vst.msk [vmem:[%s3] sm:$0xf] %vm79, %v75
  %81 = vst.msk [vmem:[%s3 + $0x4] sm:$0xf] %vm79, %v76
  %82 = vst.msk [vmem:[%s3 + $0x8] sm:$0xf] %vm79, %v77
  %83 = vst.msk [vmem:[%s3 + $0xc] sm:$0xf] %vm79, %v78
  // Predicated region
  $region14: #{forward.12} parent=0 // pred_check
    _
  $region15: #{forward.12} parent=0 // pred_check_branch
    %85 = sbr.rel (0) target = $region17
  $region16: #{forward.12} parent=0 // pred_region
    _
  $region17: #{forward.12} parent=0 // pred_fallthru
    _
  // Predicated region
  $region18: #{forward.12} parent=0 // pred_check
    _
  $region19: #{forward.12} parent=0 // pred_check_branch
    %87 = sbr.rel (0) target = $region21
  $region20: #{forward.12} parent=0 // pred_region
    _
  $region21: #{forward.12} parent=0 // pred_fallthru
    _

// kernel: forward.14
$region0: #{forward.14}
  #allocation0 [shape = 'u32[]', space=smem, size = 0x4, offset = 0x4, fixed_abs, tag = 'smem constant byte address 0x4 - core index']
  #allocation1 [shape = 'u32[72,128]{1,0:T(1,128)}', space=vmem, size = 0x9000, scoped, tag = 'internal scratch']
  %s0 = inlined_call_operand.vmem [shape: bf16[32,32], index: 0, kind: input, shape index: {}]
  %s1 = inlined_call_operand.vmem [shape: bf16[32,32], index: 1, kind: input, shape index: {}]
  %s2 = inlined_call_operand.vmem [shape: bf16[32,32], index: 2, kind: input, shape index: {}]
  %s3 = inlined_call_operand.vmem [shape: f32[1,32], index: 3, kind: input, shape index: {}]
  %s4 = inlined_call_operand.vmem [shape: f32[1,32], index: 4, kind: input, shape index: {}]
  %s5 = inlined_call_operand.vmem [shape: f32[1,32], index: 5, kind: input, shape index: {}]
  %s6 = inlined_call_operand.vmem [shape: bf16[32,32], index: 6, kind: output, shape index: {}]
  %s7 = sld [smem:[#allocation0]]
  $region34: #{forward.14} parent=0
    _
  %s9 = ssub.s32 1, %s7
  %s10 = scalar_select 0, %s9, %s7
  // Predicated region
  $region2: #{forward.14} parent=0 // pred_check
    _
  $region3: #{forward.14} parent=0 // pred_check_branch
    %12 = sbr.rel (0) target = $region5
  $region4: #{forward.14} parent=0 // pred_region
    _
  $region5: #{forward.14} parent=0 // pred_fallthru
    _
  // Predicated region
  $region6: #{forward.14} parent=0 // pred_check
    _
  $region7: #{forward.14} parent=0 // pred_check_branch
    %14 = sbr.rel (0) target = $region9
  $region8: #{forward.14} parent=0 // pred_region
    _
  $region9: #{forward.14} parent=0 // pred_fallthru
    _
  // Predicated region
  $region10: #{forward.14} parent=0 // pred_check
    _
  $region11: #{forward.14} parent=0 // pred_check_branch
    %16 = sbr.rel (0) target = $region13
  $region12: #{forward.14} parent=0 // pred_region
    _
  $region13: #{forward.14} parent=0 // pred_fallthru
    _
  // Predicated region
  $region14: #{forward.14} parent=0 // pred_check
    _
  $region15: #{forward.14} parent=0 // pred_check_branch
    %18 = sbr.rel (0) target = $region17
  $region16: #{forward.14} parent=0 // pred_region
    _
  $region17: #{forward.14} parent=0 // pred_fallthru
    _
  // Predicated region
  $region18: #{forward.14} parent=0 // pred_check
    _
  $region19: #{forward.14} parent=0 // pred_check_branch
    %20 = sbr.rel (0) target = $region21
  $region20: #{forward.14} parent=0 // pred_region
    _
  $region21: #{forward.14} parent=0 // pred_fallthru
    _
  // Predicated region
  $region22: #{forward.14} parent=0 // pred_check
    _
  $region23: #{forward.14} parent=0 // pred_check_branch
    %22 = sbr.rel (0) target = $region25
  $region24: #{forward.14} parent=0 // pred_region
    _
  $region25: #{forward.14} parent=0 // pred_fallthru
    _
  %v24 = vld [vmem:[%s0] sm:$0xf]
  %v25 = vld [vmem:[%s0 + $0x4] sm:$0xf]
  %v26 = vld [vmem:[%s0 + $0x8] sm:$0xf]
  %v27 = vld [vmem:[%s0 + $0xc] sm:$0xf]
  %v28 = vld [vmem:[%s2] sm:$0xf]
  %v29 = vld [vmem:[%s2 + $0x4] sm:$0xf]
  %v30 = vld [vmem:[%s2 + $0x8] sm:$0xf]
  %v31 = vld [vmem:[%s2 + $0xc] sm:$0xf]
  %v36 = vunpack.c.l.b16 %v24
  %v37 = vunpack.c.l.b16 %v25
  %v38 = vunpack.c.l.b16 %v26
  %v39 = vunpack.c.l.b16 %v27
  %v40 = vpack.c.b16 %v37, %v36
  %v41 = vpack.c.b16 %v39, %v38
  %v46 = vunpack.c.l.b16 %v28
  %v47 = vunpack.c.l.b16 %v29
  %v48 = vunpack.c.l.b16 %v30
  %v49 = vunpack.c.l.b16 %v31
  %v50 = vpack.c.b16 %v47, %v46
  %v51 = vpack.c.b16 %v49, %v48
  %vm54 = vcmask 261120
  %v56 = vsel %vm54, %v40, 0
  %v59 = vsel %vm54, %v41, 0
  %61 = vmatpush.bf16.msra.mxu0 0
  %62 = vmatpush.bf16.msra.mxu0 0
  %63 = vmatpush.bf16.msra.mxu0 0
  %64 = vmatpush.bf16.msra.mxu0 0
  %65 = vmatpush.bf16.msra.mxu0 0
  %66 = vmatpush.bf16.msra.mxu0 0
  %67 = vmatpush.bf16.msra.mxu0 %v51
  %68 = vmatpush.bf16.msra.mxu0 %v50
  %69 = vmatmul.bf16.gmra.mxu0 %v56
  %v70 = vpop.f32.mrf.mxu0
  %v71 = vadd.f32 0.0, %v70
  %v72 = vpop.f32.mrf.mxu0
  %v73 = vadd.f32 0.0, %v72
  %74 = vmatmul.bf16.gmra.mxu0 %v59
  %v75 = vpop.f32.mrf.mxu0
  %v76 = vadd.f32 0.0, %v75
  %v77 = vpop.f32.mrf.mxu0
  %v78 = vadd.f32 0.0, %v77
  %79 = vdwg.mxu0
  %v80 = vld [vmem:[%s1] sm:$0xf]
  %v81 = vld [vmem:[%s1 + $0x4] sm:$0xf]
  %v82 = vld [vmem:[%s1 + $0x8] sm:$0xf]
  %v83 = vld [vmem:[%s1 + $0xc] sm:$0xf]
  %v84 = vunpack.c.l.bf16 %v80
  %v85 = vunpack.c.l.bf16 %v81
  %v86 = vunpack.c.l.bf16 %v82
  %v87 = vunpack.c.l.bf16 %v83
  %v88 = vadd.f32 %v84, %v71
  %v89 = vadd.f32 %v85, %v73
  %v90 = vadd.f32 %v86, %v76
  %v91 = vadd.f32 %v87, %v78
  %v92 = vld [vmem:[%s3] sm:$0x1]
  %v94 = vperm.slane %v92, 0
  %v96 = vadd.f32 %v88, %v94
  %v97 = vadd.f32 %v89, %v94
  %v98 = vadd.f32 %v90, %v94
  %v99 = vadd.f32 %v91, %v94
  %v100 = vsel %vm54, %v96, 0.0
  %101 = vadd.xlane.f32.xlu0 %v100
  %v102 = vpop.xlane.xlu0 %101
  %v103 = vsel %vm54, %v97, 0.0
  %104 = vadd.xlane.f32.xlu0 %v103
  %v105 = vpop.xlane.xlu0 %104
  %v106 = vsel %vm54, %v98, 0.0
  %107 = vadd.xlane.f32.xlu0 %v106
  %v108 = vpop.xlane.xlu0 %107
  %v109 = vsel %vm54, %v99, 0.0
  %110 = vadd.xlane.f32.xlu0 %v109
  %v111 = vpop.xlane.xlu0 %110
  %v112 = vrcp.pop 32.0
  %v113 = vmul.f32 32.0, %v112
  %v114 = vsub.f32 1.0, %v113
  %v115 = vmul.f32 %v112, %v114
  %v116 = vadd.f32 %v112, %v115
  %vm117 = vweird.f32 %v112
  %v118 = vsel %vm117, %v112, %v116
  %v119 = vmul.f32 %v102, %v118
  %v120 = vmul.f32 %v105, %v118
  %v121 = vmul.f32 %v108, %v118
  %v122 = vmul.f32 %v111, %v118
  %v123 = vsub.f32 %v96, %v119
  %v124 = vsub.f32 %v97, %v120
  %v125 = vsub.f32 %v98, %v121
  %v126 = vsub.f32 %v99, %v122
  %v127 = vmul.f32 %v123, %v123
  %v128 = vmul.f32 %v124, %v124
  %v129 = vmul.f32 %v125, %v125
  %v130 = vmul.f32 %v126, %v126
  %v131 = vsel %vm54, %v127, 0.0
  %132 = vadd.xlane.f32.xlu0 %v131
  %v133 = vpop.xlane.xlu0 %132
  %v134 = vsel %vm54, %v128, 0.0
  %135 = vadd.xlane.f32.xlu0 %v134
  %v136 = vpop.xlane.xlu0 %135
  %v137 = vsel %vm54, %v129, 0.0
  %138 = vadd.xlane.f32.xlu0 %v137
  %v139 = vpop.xlane.xlu0 %138
  %v140 = vsel %vm54, %v130, 0.0
  %141 = vadd.xlane.f32.xlu0 %v140
  %v142 = vpop.xlane.xlu0 %141
  %v143 = vmul.f32 %v133, %v118
  %v144 = vmul.f32 %v136, %v118
  %v145 = vmul.f32 %v139, %v118
  %v146 = vmul.f32 %v142, %v118
  %v147 = vadd.f32 %v143, 1e-05
  %v148 = vadd.f32 %v144, 1e-05
  %v149 = vadd.f32 %v145, 1e-05
  %v150 = vadd.f32 %v146, 1e-05
  %v151 = vrsqrt.pop %v147
  %v152 = vmul.f32 %v151, %v147
  %v153 = vmul.f32 %v152, %v151
  %v154 = vmul.f32 0.5, %v153
  %v155 = vsub.f32 1.5, %v154
  %v156 = vmul.f32 %v151, %v155
  %vm157 = vweird.f32 %v147
  %vm158 = vweird.f32 %v151
  %vm159 = vmor %vm157, %vm158
  %v160 = vsel %vm159, %v151, %v156
  %v161 = vrsqrt.pop %v148
  %v162 = vmul.f32 %v161, %v148
  %v163 = vmul.f32 %v162, %v161
  %v164 = vmul.f32 0.5, %v163
  %v165 = vsub.f32 1.5, %v164
  %v166 = vmul.f32 %v161, %v165
  %vm167 = vweird.f32 %v148
  %vm168 = vweird.f32 %v161
  %vm169 = vmor %vm167, %vm168
  %v170 = vsel %vm169, %v161, %v166
  %v171 = vrsqrt.pop %v149
  %v172 = vmul.f32 %v171, %v149
  %v173 = vmul.f32 %v172, %v171
  %v174 = vmul.f32 0.5, %v173
  %v175 = vsub.f32 1.5, %v174
  %v176 = vmul.f32 %v171, %v175
  %vm177 = vweird.f32 %v149
  %vm178 = vweird.f32 %v171
  %vm179 = vmor %vm177, %vm178
  %v180 = vsel %vm179, %v171, %v176
  %v181 = vrsqrt.pop %v150
  %v182 = vmul.f32 %v181, %v150
  %v183 = vmul.f32 %v182, %v181
  %v184 = vmul.f32 0.5, %v183
  %v185 = vsub.f32 1.5, %v184
  %v186 = vmul.f32 %v181, %v185
  %vm187 = vweird.f32 %v150
  %vm188 = vweird.f32 %v181
  %vm189 = vmor %vm187, %vm188
  %v190 = vsel %vm189, %v181, %v186
  %v191 = vmul.f32 %v123, %v160
  %v192 = vmul.f32 %v124, %v170
  %v193 = vmul.f32 %v125, %v180
  %v194 = vmul.f32 %v126, %v190
  %v195 = vld [vmem:[%s4] sm:$0x1]
  %v197 = vperm.slane %v195, 0
  %v199 = vmul.f32 %v191, %v197
  %v200 = vmul.f32 %v192, %v197
  %v201 = vmul.f32 %v193, %v197
  %v202 = vmul.f32 %v194, %v197
  %v203 = vld [vmem:[%s5] sm:$0x1]
  %v205 = vperm.slane %v203, 0
  %v207 = vadd.f32 %v199, %v205
  %v208 = vadd.f32 %v200, %v205
  %v209 = vadd.f32 %v201, %v205
  %v210 = vadd.f32 %v202, %v205
  %v211 = vpack.c.bf16 %v207, %v207
  %v212 = vpack.c.bf16 %v208, %v208
  %v213 = vpack.c.bf16 %v209, %v209
  %v214 = vpack.c.bf16 %v210, %v210
  %vm215 = vcmask 257024
  %216 = vst.msk [vmem:[%s6] sm:$0xf] %vm215, %v211
  %217 = vst.msk [vmem:[%s6 + $0x4] sm:$0xf] %vm215, %v212
  %218 = vst.msk [vmem:[%s6 + $0x8] sm:$0xf] %vm215, %v213
  %219 = vst.msk [vmem:[%s6 + $0xc] sm:$0xf] %vm215, %v214
  // Predicated region
  $region26: #{forward.14} parent=0 // pred_check
    _
  $region27: #{forward.14} parent=0 // pred_check_branch
    %221 = sbr.rel (0) target = $region29
  $region28: #{forward.14} parent=0 // pred_region
    _
  $region29: #{forward.14} parent=0 // pred_fallthru
    _
  // Predicated region
  $region30: #{forward.14} parent=0 // pred_check
    _
  $region31: #{forward.14} parent=0 // pred_check_branch
    %223 = sbr.rel (0) target = $region33
  $region32: #{forward.14} parent=0 // pred_region
    _
  $region33: #{forward.14} parent=0 // pred_fallthru
    _

// kernel: forward.13
$region0: #{forward.13}
  #allocation0 [shape = 'u32[]', space=smem, size = 0x4, offset = 0x4, fixed_abs, tag = 'smem constant byte address 0x4 - core index']
  #allocation1 [shape = 'u32[72,128]{1,0:T(1,128)}', space=vmem, size = 0x9000, scoped, tag = 'internal scratch']
  #allocation2 [shape = 'f32[2,16,1]{2,1,0:T(8,128)}', space=vmem, size = 0x4000, scoped, tag = 'scratch operand']
  #allocation3 [shape = 'f32[2,16,1]{2,1,0:T(8,128)}', space=vmem, size = 0x4000, scoped, tag = 'scratch operand']
  #allocation4 [shape = 'f32[16,32]{1,0:T(8,128)}', space=vmem, size = 0x2000, scoped, tag = 'scratch operand']
  %s0 = inlined_call_operand.vmem [shape: bf16[2,16,96], index: 0, kind: input, shape index: {}, may-alias: {0,1}]
  %s1 = inlined_call_operand.vmem [shape: bf16[2,16,96], index: 1, kind: input, shape index: {}, may-alias: {0,1}]
  %s2 = inlined_call_operand.vmem [shape: bf16[2,16,32], index: 2, kind: output, shape index: {}]
  %s3 = sld [smem:[#allocation0]]
  $region49: #{forward.13} parent=0
    _
  %s5 = ssub.s32 1, %s3
  %s6 = scalar_select 0, %s5, %s3
  loop: start=0, step=1, limit=4
  $region2: #{forward.13} parent=0 // loop_pre_header
    _
  $region3: #{forward.13} parent=0 // loop_header
    %s8 = sphi 0, %s12
    %p9 = scmp.ge.s32.totalorder %s8, 4
    %s15 = sphi 0, %s27
    %s16 = sphi 0, %s23
    %s17 = sphi 0, %s15
    %s18 = sphi 0, %s16
    %s19 = sphi 0, %s17
    %s20 = sphi 0, %s18
    %s30 = sphi 0, %s32
    %s33 = sphi 0, %s30
    %s34 = sphi 0, %s33
    %s50 = sphi 0, %s34
    %s58 = sphi 0, %s60
    %s61 = sphi 0, %s58
    %s62 = sphi 0, %s61
    %s78 = sphi 0, %s62
    %s84 = sphi 0, %s86
    %s87 = sphi 0, %s84
    %s88 = sphi 0, %s87
    %s104 = sphi 0, %s88
  $region4: #{forward.13} parent=0 // loop_header_branch
    %11 = sbr.rel (%p9) target = $region8
  $region5: #{forward.13} parent=0 // loop_body
    %s13 = ssub.s32 %s8, 1
    %s14 = ssub.s32 %s8, 2
    %s21 = sadd.s32 1, %s16
    %p22 = scmp.ge.s32.totalorder %s21, 1
    %s23 = scalar_select %p22, 0, %s21
    %s24 = sadd.s32 1, %s15
    %s25 = scalar_select %p22, %s24, %s15
    %p26 = scmp.ge.s32.totalorder %s25, 2
    %s27 = scalar_select %p26, 0, %s25
    %s28 = ssub.s32 %s15, %s27
    %p29 = scmp.eq.s32.totalorder %s28, 0
    %s31 = sadd.s32 %s30, 1
    %s32 = scalar_select %p29, %s30, %s31
    %p35 = pneg %p29
    %p36 = scmp.eq.s32.totalorder %s8, 1
    %p37 = por %p35, %p36
    %p38 = scmp.ne.s32.totalorder %s30, %s33
    %p39 = scmp.eq.s32.totalorder %s8, 0
    %p40 = por %p38, %p39
    %p41 = scmp.ne.s32.totalorder %s30, %s33
    %p42 = scmp.eq.s32.totalorder %s13, 1
    %p43 = por %p41, %p42
    %p44 = scmp.ne.s32.totalorder %s33, %s34
    %p45 = scmp.eq.s32.totalorder %s13, 0
    %p46 = por %p44, %p45
    %p47 = scmp.ne.s32.totalorder %s33, %s34
    %p48 = scmp.eq.s32.totalorder %s14, 1
    %p49 = por %p47, %p48
    %p51 = scmp.ne.s32.totalorder %s34, %s50
    %p52 = scmp.eq.s32.totalorder %s14, 0
    %p53 = por %p51, %p52
    %s54 = ssub.s32 %s15, %s27
    %s55 = ssub.s32 %s16, %s23
    %s56 = sor.u32 %s54, %s55
    %p57 = scmp.eq.s32.totalorder %s56, 0
    %s59 = sadd.s32 %s58, 1
    %s60 = scalar_select %p57, %s58, %s59
    %p63 = pneg %p57
    %p64 = scmp.eq.s32.totalorder %s8, 1
    %p65 = por %p63, %p64
    %p66 = scmp.ne.s32.totalorder %s58, %s61
    %p67 = scmp.eq.s32.totalorder %s8, 0
    %p68 = por %p66, %p67
    %p69 = scmp.ne.s32.totalorder %s58, %s61
    %p70 = scmp.eq.s32.totalorder %s13, 1
    %p71 = por %p69, %p70
    %p72 = scmp.ne.s32.totalorder %s61, %s62
    %p73 = scmp.eq.s32.totalorder %s13, 0
    %p74 = por %p72, %p73
    %p75 = scmp.ne.s32.totalorder %s61, %s62
    %p76 = scmp.eq.s32.totalorder %s14, 1
    %p77 = por %p75, %p76
    %p79 = scmp.ne.s32.totalorder %s62, %s78
    %p80 = scmp.eq.s32.totalorder %s14, 0
    %p81 = por %p79, %p80
    %s82 = ssub.s32 %s15, %s27
    %p83 = scmp.eq.s32.totalorder %s82, 0
    %s85 = sadd.s32 %s84, 1
    %s86 = scalar_select %p83, %s84, %s85
    %p89 = pneg %p83
    %p90 = scmp.eq.s32.totalorder %s8, 1
    %p91 = por %p89, %p90
    %p92 = scmp.ne.s32.totalorder %s84, %s87
    %p93 = scmp.eq.s32.totalorder %s8, 0
    %p94 = por %p92, %p93
    %p95 = scmp.ne.s32.totalorder %s84, %s87
    %p96 = scmp.eq.s32.totalorder %s13, 1
    %p97 = por %p95, %p96
    %p98 = scmp.ne.s32.totalorder %s87, %s88
    %p99 = scmp.eq.s32.totalorder %s13, 0
    %p100 = por %p98, %p99
    %p101 = scmp.ne.s32.totalorder %s87, %s88
    %p102 = scmp.eq.s32.totalorder %s14, 1
    %p103 = por %p101, %p102
    %p105 = scmp.ne.s32.totalorder %s88, %s104
    %p106 = scmp.eq.s32.totalorder %s14, 0
    %p107 = por %p105, %p106
    %p108 = scmp.le.s32.totalorder 1, %s8
    %p109 = scmp.lt.s32.totalorder %s8, 3
    %p110 = pnand %p108, %p109
    %p111 = pneg %p110
    // Predicated region
    $region9: #{forward.13} parent=5 // pred_check
      _
    $region10: #{forward.13} parent=5 // pred_check_branch
      %113 = sbr.rel (%p110) target = $region12
    $region11: #{forward.13} parent=5 // pred_region
      %s114 = ssub.s32 %s8, 1
    $region12: #{forward.13} parent=5 // pred_fallthru
      _
    %p115 = scmp.lt.s32.totalorder %s8, 2
    // Predicated region
    $region13: #{forward.13} parent=5 // pred_check
      %p116 = pneg %p115
    $region14: #{forward.13} parent=5 // pred_check_branch
      %118 = sbr.rel (%p116) target = $region16
    $region15: #{forward.13} parent=5 // pred_region
      // Predicated region
      $region17: #{forward.13} parent=15 // pred_check
        %p119 = pneg %p40
      $region18: #{forward.13} parent=15 // pred_check_branch
        %121 = sbr.rel (%p119) target = $region20
      $region19: #{forward.13} parent=15 // pred_region
        %p122 = scmp.lt.s32.totalorder %s15, 1
        %s123 = scalar_select %p122, %s15, 1
        %s124 = smul.addr %s123, 2
        %s125 = smul.addr %s124, 4
        %s126 = scalar_lea.vmem %s0, %s125
      $region20: #{forward.13} parent=15 // pred_fallthru
        _
      // Predicated region
      $region21: #{forward.13} parent=15 // pred_check
        %p127 = pneg %p68
      $region22: #{forward.13} parent=15 // pred_check_branch
        %129 = sbr.rel (%p127) target = $region24
      $region23: #{forward.13} parent=15 // pred_region
        %s130 = smul.u32 2, %s16
        %p131 = scmp.lt.s32.totalorder %s15, 1
        %s132 = scalar_select %p131, %s15, 1
        %p133 = scmp.lt.s32.totalorder %s130, 1
        %s134 = scalar_select %p133, %s130, 1
        %s135 = smul.addr %s132, 2
        %s136 = sadd.s32 %s134, %s135
        %s137 = smul.addr %s136, 4
        %s138 = scalar_lea.vmem %s1, %s137
        %s139 = smul.u32 2, %s16
      $region24: #{forward.13} parent=15 // pred_fallthru
        _
    $region16: #{forward.13} parent=5 // pred_fallthru
      _
    %p140 = scmp.le.s32.totalorder 1, %s8
    %p141 = scmp.lt.s32.totalorder %s8, 3
    %p142 = pnand %p140, %p141
    %p143 = pneg %p142
    // Predicated region
    $region25: #{forward.13} parent=5 // pred_check
      _
    $region26: #{forward.13} parent=5 // pred_check_branch
      %145 = sbr.rel (%p142) target = $region28
    $region27: #{forward.13} parent=5 // pred_region
      %s146 = ssub.s32 %s8, 1
      %p147 = scmp.lt.s32.totalorder %s17, 1
      %s148 = scalar_select %p147, %s17, 1
      %s149 = smul.addr %s148, 2
      %s150 = smul.addr %s149, 4
      %s151 = scalar_lea.vmem %s0, %s150
      %p152 = pneg %p46
      %p153 = pneg %p43
      %s154 = smul.u32 2, %s18
      %p155 = scmp.lt.s32.totalorder %s17, 1
      %s156 = scalar_select %p155, %s17, 1
      %p157 = scmp.lt.s32.totalorder %s154, 1
      %s158 = scalar_select %p157, %s154, 1
      %s159 = smul.addr %s156, 2
      %s160 = sadd.s32 %s158, %s159
      %s161 = smul.addr %s160, 4
      %s162 = scalar_lea.vmem %s1, %s161
      %p163 = pneg %p74
      %p164 = pneg %p71
      %p165 = pneg %p100
      %p166 = pneg %p97
      %p167 = scmp.lt.s32.totalorder %s17, 1
      %s168 = scalar_select %p167, %s17, 1
      %s169 = smul.addr %s168, 2
      %s170 = smul.addr %s169, 4
      %s171 = scalar_lea.vmem %s2, %s170
      %p172 = scmp.lt.s32.totalorder %s17, 1
      %s173 = scalar_select %p172, %s17, 1
      %s174 = smul.addr %s173, 2
      %s175 = smul.addr %s174, 4
      %s176 = scalar_lea.vmem %s0, %s175
      %s177 = smul.u32 2, %s18
      %p178 = scmp.lt.s32.totalorder %s17, 1
      %s179 = scalar_select %p178, %s17, 1
      %p180 = scmp.lt.s32.totalorder %s177, 1
      %s181 = scalar_select %p180, %s177, 1
      %s182 = smul.addr %s179, 2
      %s183 = sadd.s32 %s181, %s182
      %s184 = smul.addr %s183, 4
      %s185 = scalar_lea.vmem %s1, %s184
      %s186 = smul.u32 2, %s18
      %p187 = scmp.lt.s32.totalorder %s17, 1
      %s188 = scalar_select %p187, %s17, 1
      %s189 = smul.addr %s188, 2
      %s190 = smul.addr %s189, 4
      %s191 = scalar_lea.vmem %s2, %s190
      %p193 = scmp.eq.s32.totalorder %s18, 0
      // Predicated region
      $region29: #{forward.13} parent=27 // pred_check
        %p194 = pneg %p193
      $region30: #{forward.13} parent=27 // pred_check_branch
        %196 = sbr.rel (%p194) target = $region32
      $region31: #{forward.13} parent=27 // pred_region
        %vm197 = vcmask 7168
        %198 = vst.msk [vmem:[#allocation2] sm:$0xff] %vm197, -inf
        %199 = vst.msk [vmem:[#allocation2 + $0x8] sm:$0xff] %vm197, -inf
        %200 = vst.msk [vmem:[#allocation2 + $0x10] sm:$0xff] %vm197, -inf
        %201 = vst.msk [vmem:[#allocation2 + $0x18] sm:$0xff] %vm197, -inf
        %202 = vst.msk [vmem:[#allocation3] sm:$0xff] %vm197, 0.0
        %203 = vst.msk [vmem:[#allocation3 + $0x8] sm:$0xff] %vm197, 0.0
        %204 = vst.msk [vmem:[#allocation3 + $0x10] sm:$0xff] %vm197, 0.0
        %205 = vst.msk [vmem:[#allocation3 + $0x18] sm:$0xff] %vm197, 0.0
        %vm206 = vcmask 261120
        %207 = vst.msk [vmem:[#allocation4] sm:$0xff] %vm206, 0.0
        %208 = vst.msk [vmem:[#allocation4 + $0x8] sm:$0xff] %vm206, 0.0
      $region32: #{forward.13} parent=27 // pred_fallthru
        _
      %v209 = vld [vmem:[%s176] sm:$0xf]
      %v210 = vld [vmem:[%s176 + $0x4] sm:$0xf]
      %v211 = vld [vmem:[%s185] sm:$0xf]
      %v212 = vld [vmem:[%s185 + $0x4] sm:$0xf]
      %v215 = vunpack.c.l.b16 %v209
      %v216 = vunpack.c.l.b16 %v210
      %v217 = vpack.c.b16 %v216, %v215
      %v220 = vunpack.c.l.b16 %v211
      %v221 = vunpack.c.l.b16 %v212
      %v222 = vpack.c.b16 %v221, %v220
      %223 = vrot.lane.b32.xlu0 %v222, 96
      %v224 = vpop.permute.xlu0 %223
      %vm225 = vcmask 130048
      %v227 = vsel %vm225, %v217, 0
      %v230 = vsel %vm225, %v224, 0
      %232 = vmatpush.bf16.xpose.msra.mxu0 0
      %233 = vmatpush.bf16.xpose.msra.mxu0 0
      %234 = vmatpush.bf16.xpose.msra.mxu0 0
      %235 = vmatpush.bf16.xpose.msra.mxu0 0
      %236 = vmatpush.bf16.xpose.msra.mxu0 0
      %237 = vmatpush.bf16.xpose.msra.mxu0 0
      %238 = vmatpush.bf16.xpose.msra.mxu0 0
      %239 = vmatpush.bf16.xpose.msra.mxu0 %v230
      %240 = vmatmul.bf16.gmra.mxu0 %v227
      %v241 = vpop.f32.mrf.mxu0
      %v242 = vadd.f32 0.0, %v241
      %v243 = vpop.f32.mrf.mxu0
      %v244 = vadd.f32 0.0, %v243
      %245 = vdwg.mxu0
      %v246 = vmul.f32 %v242, 0.25
      %v247 = vmul.f32 %v244, 0.25
      %v248 = vld [vmem:[#allocation2] sm:$0xff]
      %v249 = vld [vmem:[#allocation2 + $0x8] sm:$0xff]
      %v250 = vsel %vm225, %v246, -inf
      %251 = vmax.xlane.f32.xlu0 %v250
      %v252 = vpop.xlane.xlu0 %251
      %v253 = vsel %vm225, %v247, -inf
      %254 = vmax.xlane.f32.xlu0 %v253
      %v255 = vpop.xlane.xlu0 %254
      %v256 = vmax.f32 %v248, %v252
      %v257 = vmax.f32 %v249, %v255
      %v258 = vsub.f32 %v248, %v256
      %v259 = vsub.f32 %v249, %v257
      %v260 = vmul.f32 %v258, 1.442695
      %v261 = vpow.pop %v260
      %v262 = vmul.f32 %v259, 1.442695
      %v263 = vpow.pop %v262
      %265 = vset.pattern.permute.xlu0 0
      %266 = vperm.xlu0 %265, %v256
      %v267 = vpop.permute.xlu0 %266
      %270 = vset.pattern.permute.xlu0 0
      %271 = vperm.xlu0 %270, %v257
      %v272 = vpop.permute.xlu0 %271
      %v274 = vsub.f32 %v246, %v267
      %v275 = vsub.f32 %v247, %v272
      %v276 = vmul.f32 %v274, 1.442695
      %v277 = vpow.pop %v276
      %v278 = vmul.f32 %v275, 1.442695
      %v279 = vpow.pop %v278
      %v280 = vld [vmem:[#allocation3] sm:$0xff]
      %v281 = vld [vmem:[#allocation3 + $0x8] sm:$0xff]
      %v282 = vmul.f32 %v261, %v280
      %v283 = vmul.f32 %v263, %v281
      %v284 = vsel %vm225, %v277, 0.0
      %285 = vadd.xlane.f32.xlu0 %v284
      %v286 = vpop.xlane.xlu0 %285
      %v287 = vsel %vm225, %v279, 0.0
      %288 = vadd.xlane.f32.xlu0 %v287
      %v289 = vpop.xlane.xlu0 %288
      %v290 = vadd.f32 %v282, %v286
      %v291 = vadd.f32 %v283, %v289
      %vm292 = vcmask 7168
      %293 = vst.msk [vmem:[#allocation3] sm:$0xff] %vm292, %v290
      %294 = vst.msk [vmem:[#allocation3 + $0x8] sm:$0xff] %vm292, %v291
      %v295 = vld [vmem:[#allocation4] sm:$0xff]
      %v296 = vld [vmem:[#allocation4 + $0x8] sm:$0xff]
      %298 = vset.pattern.permute.xlu0 0
      %299 = vperm.xlu0 %298, %v261
      %v300 = vpop.permute.xlu0 %299
      %303 = vset.pattern.permute.xlu0 0
      %304 = vperm.xlu0 %303, %v263
      %v305 = vpop.permute.xlu0 %304
      %v307 = vmul.f32 %v300, %v295
      %v308 = vmul.f32 %v305, %v296
      %v309 = vpack.c.bf16 %v279, %v277
      %310 = vrot.lane.b32.xlu0 %v222, 64
      %v311 = vpop.permute.xlu0 %310
      %v314 = vsel %vm225, %v309, 0
      %316 = vmatpush.bf16.msra.mxu0 0
      %317 = vmatpush.bf16.msra.mxu0 0
      %318 = vmatpush.bf16.msra.mxu0 0
      %319 = vmatpush.bf16.msra.mxu0 0
      %320 = vmatpush.bf16.msra.mxu0 0
      %321 = vmatpush.bf16.msra.mxu0 0
      %322 = vmatpush.bf16.msra.mxu0 0
      %323 = vmatpush.bf16.msra.mxu0 %v311
      %324 = vmatmul.bf16.gmra.mxu0 %v314
      %v325 = vpop.f32.mrf.mxu0
      %v326 = vadd.f32 0.0, %v325
      %v327 = vpop.f32.mrf.mxu0
      %v328 = vadd.f32 0.0, %v327
      %329 = vdwg.mxu0
      %v330 = vadd.f32 %v307, %v326
      %v331 = vadd.f32 %v308, %v328
      %332 = vst.msk [vmem:[#allocation4] sm:$0xff] %vm225, %v330
      %333 = vst.msk [vmem:[#allocation4 + $0x8] sm:$0xff] %vm225, %v331
      %334 = vst.msk [vmem:[#allocation2] sm:$0xff] %vm292, %v256
      %335 = vst.msk [vmem:[#allocation2 + $0x8] sm:$0xff] %vm292, %v257
      %v336 = vld [vmem:[%s176] sm:$0xf]
      %v337 = vld [vmem:[%s176 + $0x4] sm:$0xf]
      %v338 = vld [vmem:[%s185] sm:$0xf]
      %v339 = vld [vmem:[%s185 + $0x4] sm:$0xf]
      %v342 = vunpack.c.l.b16 %v336
      %v343 = vunpack.c.l.b16 %v337
      %v344 = vpack.c.b16 %v343, %v342
      %345 = vrot.lane.b32.xlu0 %v344, 112
      %v346 = vpop.permute.xlu0 %345
      %v349 = vunpack.c.l.b16 %v338
      %v350 = vunpack.c.l.b16 %v339
      %v351 = vpack.c.b16 %v350, %v349
      %352 = vrot.lane.b32.xlu0 %v351, 80
      %v353 = vpop.permute.xlu0 %352
      %v355 = vsel %vm225, %v346, 0
      %v358 = vsel %vm225, %v353, 0
      %360 = vmatpush.bf16.xpose.msra.mxu0 0
      %361 = vmatpush.bf16.xpose.msra.mxu0 0
      %362 = vmatpush.bf16.xpose.msra.mxu0 0
      %363 = vmatpush.bf16.xpose.msra.mxu0 0
      %364 = vmatpush.bf16.xpose.msra.mxu0 0
      %365 = vmatpush.bf16.xpose.msra.mxu0 0
      %366 = vmatpush.bf16.xpose.msra.mxu0 0
      %367 = vmatpush.bf16.xpose.msra.mxu0 %v358
      %368 = vmatmul.bf16.gmra.mxu0 %v355
      %v369 = vpop.f32.mrf.mxu0
      %v370 = vadd.f32 0.0, %v369
      %v371 = vpop.f32.mrf.mxu0
      %v372 = vadd.f32 0.0, %v371
      %373 = vdwg.mxu0
      %v374 = vmul.f32 %v370, 0.25
      %v375 = vmul.f32 %v372, 0.25
      %s376 = scalar_lea.vmem [#allocation2], 16
      %v377 = vld [vmem:[%s376] sm:$0xff]
      %v378 = vld [vmem:[%s376 + $0x8] sm:$0xff]
      %v379 = vsel %vm225, %v374, -inf
      %380 = vmax.xlane.f32.xlu0 %v379
      %v381 = vpop.xlane.xlu0 %380
      %v382 = vsel %vm225, %v375, -inf
      %383 = vmax.xlane.f32.xlu0 %v382
      %v384 = vpop.xlane.xlu0 %383
      %v385 = vmax.f32 %v377, %v381
      %v386 = vmax.f32 %v378, %v384
      %v387 = vsub.f32 %v377, %v385
      %v388 = vsub.f32 %v378, %v386
      %v389 = vmul.f32 %v387, 1.442695
      %v390 = vpow.pop %v389
      %v391 = vmul.f32 %v388, 1.442695
      %v392 = vpow.pop %v391
      %394 = vset.pattern.permute.xlu0 0
      %395 = vperm.xlu0 %394, %v385
      %v396 = vpop.permute.xlu0 %395
      %399 = vset.pattern.permute.xlu0 0
      %400 = vperm.xlu0 %399, %v386
      %v401 = vpop.permute.xlu0 %400
      %v403 = vsub.f32 %v374, %v396
      %v404 = vsub.f32 %v375, %v401
      %v405 = vmul.f32 %v403, 1.442695
      %v406 = vpow.pop %v405
      %v407 = vmul.f32 %v404, 1.442695
      %v408 = vpow.pop %v407
      %s409 = scalar_lea.vmem [#allocation3], 16
      %v410 = vld [vmem:[%s409] sm:$0xff]
      %v411 = vld [vmem:[%s409 + $0x8] sm:$0xff]
      %v412 = vmul.f32 %v390, %v410
      %v413 = vmul.f32 %v392, %v411
      %v414 = vsel %vm225, %v406, 0.0
      %415 = vadd.xlane.f32.xlu0 %v414
      %v416 = vpop.xlane.xlu0 %415
      %v417 = vsel %vm225, %v408, 0.0
      %418 = vadd.xlane.f32.xlu0 %v417
      %v419 = vpop.xlane.xlu0 %418
      %v420 = vadd.f32 %v412, %v416
      %v421 = vadd.f32 %v413, %v419
      %422 = vst.msk [vmem:[%s409] sm:$0xff] %vm292, %v420
      %423 = vst.msk [vmem:[%s409 + $0x8] sm:$0xff] %vm292, %v421
      %v424 = vld [vmem:[#allocation4] sm:$0xff]
      %v425 = vld [vmem:[#allocation4 + $0x8] sm:$0xff]
      %427 = vset.pattern.permute.xlu0 0
      %428 = vperm.xlu0 %427, %v390
      %v429 = vpop.permute.xlu0 %428
      %432 = vset.pattern.permute.xlu0 0
      %433 = vperm.xlu0 %432, %v392
      %v434 = vpop.permute.xlu0 %433
      %v436 = vmul.f32 %v429, %v424
      %v437 = vmul.f32 %v434, %v425
      %v438 = vpack.c.bf16 %v408, %v406
      %439 = vrot.lane.b32.xlu0 %v351, 48
      %v440 = vpop.permute.xlu0 %439
      %v443 = vsel %vm225, %v438, 0
      %445 = vmatpush.bf16.msra.mxu0 0
      %446 = vmatpush.bf16.msra.mxu0 0
      %447 = vmatpush.bf16.msra.mxu0 0
      %448 = vmatpush.bf16.msra.mxu0 0
      %449 = vmatpush.bf16.msra.mxu0 0
      %450 = vmatpush.bf16.msra.mxu0 0
      %451 = vmatpush.bf16.msra.mxu0 0
      %452 = vmatpush.bf16.msra.mxu0 %v440
      %453 = vmatmul.bf16.gmra.mxu0 %v443
      %v454 = vpop.f32.mrf.mxu0
      %v455 = vadd.f32 0.0, %v454
      %v456 = vpop.f32.mrf.mxu0
      %v457 = vadd.f32 0.0, %v456
      %458 = vdwg.mxu0
      %461 = vrot.lane.b32.xlu0 %v455, 16
      %v462 = vpop.permute.xlu0 %461
      %463 = vrot.lane.b32.xlu0 %v457, 16
      %v464 = vpop.permute.xlu0 %463
      %v467 = vadd.f32 %v436, %v462
      %v468 = vadd.f32 %v437, %v464
      %vm469 = vcmask 261248
      %470 = vst.msk [vmem:[#allocation4] sm:$0xff] %vm469, %v467
      %471 = vst.msk [vmem:[#allocation4 + $0x8] sm:$0xff] %vm469, %v468
      %472 = vst.msk [vmem:[%s376] sm:$0xff] %vm292, %v385
      %473 = vst.msk [vmem:[%s376 + $0x8] sm:$0xff] %vm292, %v386
      // Predicated region
      $region33: #{forward.13} parent=27 // pred_check
        %p474 = pneg %p193
      $region34: #{forward.13} parent=27 // pred_check_branch
        %476 = sbr.rel (%p474) target = $region36
      $region35: #{forward.13} parent=27 // pred_region
        %v477 = vld [vmem:[#allocation4] sm:$0xff]
        %v478 = vld [vmem:[#allocation4 + $0x8] sm:$0xff]
        %v479 = vld [vmem:[#allocation3] sm:$0xff]
        %v480 = vld [vmem:[#allocation3 + $0x8] sm:$0xff]
        %482 = vset.pattern.permute.xlu0 0
        %483 = vperm.xlu0 %482, %v479
        %v484 = vpop.permute.xlu0 %483
        %487 = vset.pattern.permute.xlu0 0
        %488 = vperm.xlu0 %487, %v480
        %v489 = vpop.permute.xlu0 %488
        %v491 = vrcp.pop %v484
        %v492 = vmul.f32 %v484, %v491
        %v493 = vsub.f32 1.0, %v492
        %v494 = vmul.f32 %v491, %v493
        %v495 = vadd.f32 %v491, %v494
        %vm496 = vweird.f32 %v484
        %vm497 = vweird.f32 %v491
        %vm498 = vmor %vm496, %vm497
        %v499 = vsel %vm498, %v491, %v495
        %v500 = vand.u32 2147483647, %v484
        %vm501 = vcmp.eq.f32.partialorder %v500, 8.507059e+37
        %v502 = vand.u32 %v484, 2147483648
        %v503 = vor.u32 1.1754944e-38, %v502
        %v504 = vsel %vm501, %v503, %v499
        %v505 = vmul.f32 %v477, %v504
        %v506 = vrcp.pop %v489
        %v507 = vmul.f32 %v489, %v506
        %v508 = vsub.f32 1.0, %v507
        %v509 = vmul.f32 %v506, %v508
        %v510 = vadd.f32 %v506, %v509
        %vm511 = vweird.f32 %v489
        %vm512 = vweird.f32 %v506
        %vm513 = vmor %vm511, %vm512
        %v514 = vsel %vm513, %v506, %v510
        %v515 = vand.u32 2147483647, %v489
        %vm516 = vcmp.eq.f32.partialorder %v515, 8.507059e+37
        %v517 = vand.u32 %v489, 2147483648
        %v518 = vor.u32 1.1754944e-38, %v517
        %v519 = vsel %vm516, %v518, %v514
        %v520 = vmul.f32 %v478, %v519
        %521 = vst.msk [vmem:[#allocation4] sm:$0xff] %vm225, %v505
        %522 = vst.msk [vmem:[#allocation4 + $0x8] sm:$0xff] %vm225, %v520
        %v523 = vld [vmem:[#allocation4] sm:$0xff]
        %v524 = vld [vmem:[#allocation4 + $0x8] sm:$0xff]
        %v525 = vld [vmem:[%s409] sm:$0xff]
        %v526 = vld [vmem:[%s409 + $0x8] sm:$0xff]
        %528 = vset.pattern.permute.xlu0 0
        %529 = vperm.xlu0 %528, %v525
        %v530 = vpop.permute.xlu0 %529
        %533 = vset.pattern.permute.xlu0 0
        %534 = vperm.xlu0 %533, %v526
        %v535 = vpop.permute.xlu0 %534
        %v537 = vrcp.pop %v530
        %v538 = vmul.f32 %v530, %v537
        %v539 = vsub.f32 1.0, %v538
        %v540 = vmul.f32 %v537, %v539
        %v541 = vadd.f32 %v537, %v540
        %vm542 = vweird.f32 %v530
        %vm543 = vweird.f32 %v537
        %vm544 = vmor %vm542, %vm543
        %v545 = vsel %vm544, %v537, %v541
        %v546 = vand.u32 2147483647, %v530
        %vm547 = vcmp.eq.f32.partialorder %v546, 8.507059e+37
        %v548 = vand.u32 %v530, 2147483648
        %v549 = vor.u32 1.1754944e-38, %v548
        %v550 = vsel %vm547, %v549, %v545
        %v551 = vmul.f32 %v523, %v550
        %v552 = vrcp.pop %v535
        %v553 = vmul.f32 %v535, %v552
        %v554 = vsub.f32 1.0, %v553
        %v555 = vmul.f32 %v552, %v554
        %v556 = vadd.f32 %v552, %v555
        %vm557 = vweird.f32 %v535
        %vm558 = vweird.f32 %v552
        %vm559 = vmor %vm557, %vm558
        %v560 = vsel %vm559, %v552, %v556
        %v561 = vand.u32 2147483647, %v535
        %vm562 = vcmp.eq.f32.partialorder %v561, 8.507059e+37
        %v563 = vand.u32 %v535, 2147483648
        %v564 = vor.u32 1.1754944e-38, %v563
        %v565 = vsel %vm562, %v564, %v560
        %v566 = vmul.f32 %v524, %v565
        %567 = vst.msk [vmem:[#allocation4] sm:$0xff] %vm469, %v551
        %568 = vst.msk [vmem:[#allocation4 + $0x8] sm:$0xff] %vm469, %v566
        %v569 = vld [vmem:[#allocation4] sm:$0xff]
        %v570 = vld [vmem:[#allocation4 + $0x8] sm:$0xff]
        %v571 = vpack.c.bf16 %v569, %v569
        %v572 = vpack.c.bf16 %v570, %v570
        %vm573 = vcmask 257024
        %574 = vst.msk [vmem:[%s191] sm:$0xf] %vm573, %v571
        %575 = vst.msk [vmem:[%s191 + $0x4] sm:$0xf] %vm573, %v572
      $region36: #{forward.13} parent=27 // pred_fallthru
        _
      %p576 = scmp.lt.s32.totalorder %s17, 1
      %s577 = scalar_select %p576, %s17, 1
      %s578 = smul.addr %s577, 2
      %s579 = smul.addr %s578, 4
      %s580 = scalar_lea.vmem %s2, %s579
      // Predicated region
      $region37: #{forward.13} parent=27 // pred_check
        %p581 = pneg %p97
      $region38: #{forward.13} parent=27 // pred_check_branch
        %583 = sbr.rel (%p581) target = $region40
      $region39: #{forward.13} parent=27 // pred_region
        _
      $region40: #{forward.13} parent=27 // pred_fallthru
        _
    $region28: #{forward.13} parent=5 // pred_fallthru
      _
    %p584 = scmp.le.s32.totalorder 2, %s8
    // Predicated region
    $region41: #{forward.13} parent=5 // pred_check
      %p585 = pneg %p584
    $region42: #{forward.13} parent=5 // pred_check_branch
      %587 = sbr.rel (%p585) target = $region44
    $region43: #{forward.13} parent=5 // pred_region
      %s588 = ssub.s32 %s8, 2
      // Predicated region
      $region45: #{forward.13} parent=43 // pred_check
        %p589 = pneg %p103
      $region46: #{forward.13} parent=43 // pred_check_branch
        %591 = sbr.rel (%p589) target = $region48
      $region47: #{forward.13} parent=43 // pred_region
        %p592 = scmp.lt.s32.totalorder %s19, 1
        %s593 = scalar_select %p592, %s19, 1
        %s594 = smul.addr %s593, 2
        %s595 = smul.addr %s594, 4
        %s596 = scalar_lea.vmem %s2, %s595
      $region48: #{forward.13} parent=43 // pred_fallthru
        _
    $region44: #{forward.13} parent=5 // pred_fallthru
      _
  $region6: #{forward.13} parent=0 // loop_footer
    %s12 = sadd.s32 1, %s8
  $region7: #{forward.13} parent=0 // loop_footer_branch
    %7 = sbr.rel target = $region3
  $region8: #{forward.13} parent=0 // loop_exit
    _

// kernel: forward.20
$region0: #{forward.20}
  #allocation0 [shape = 'u32[]', space=smem, size = 0x4, offset = 0x4, fixed_abs, tag = 'smem constant byte address 0x4 - core index']
  #allocation1 [shape = 'u32[72,128]{1,0:T(1,128)}', space=vmem, size = 0x9000, scoped, tag = 'internal scratch']
  %s0 = inlined_call_operand.vmem [shape: bf16[2,2,8,32], index: 0, kind: input, shape index: {}]
  %s1 = inlined_call_operand.vmem [shape: bf16[2,2,32], index: 1, kind: output, shape index: {}]
  %s2 = sld [smem:[#allocation0]]
  $region37: #{forward.20} parent=0
    _
  %s4 = ssub.s32 1, %s2
  %s5 = scalar_select 0, %s4, %s2
  loop: start=0, step=1, limit=4
  $region2: #{forward.20} parent=0 // loop_pre_header
    _
  $region3: #{forward.20} parent=0 // loop_header
    %s7 = sphi 0, %s11
    %p8 = scmp.ge.s32.totalorder %s7, 4
    %s17 = sphi 0, %s19
    %s20 = sphi 0, %s17
    %s21 = sphi 0, %s20
    %s37 = sphi 0, %s21
    %s43 = sphi 0, %s45
    %s46 = sphi 0, %s43
    %s47 = sphi 0, %s46
    %s63 = sphi 0, %s47
  $region4: #{forward.20} parent=0 // loop_header_branch
    %10 = sbr.rel (%p8) target = $region8
  $region5: #{forward.20} parent=0 // loop_body
    %s12 = ssub.s32 %s7, 1
    %s13 = ssub.s32 %s7, 2
    %s14 = sadd.s32 %s7, 1
    %s15 = ssub.s32 %s7, %s14
    %p16 = scmp.eq.s32.totalorder %s15, 0
    %s18 = sadd.s32 %s17, 1
    %s19 = scalar_select %p16, %s17, %s18
    %p22 = pneg %p16
    %p23 = scmp.eq.s32.totalorder %s7, 1
    %p24 = por %p22, %p23
    %p25 = scmp.ne.s32.totalorder %s17, %s20
    %p26 = scmp.eq.s32.totalorder %s7, 0
    %p27 = por %p25, %p26
    %p28 = scmp.ne.s32.totalorder %s17, %s20
    %p29 = scmp.eq.s32.totalorder %s12, 1
    %p30 = por %p28, %p29
    %p31 = scmp.ne.s32.totalorder %s20, %s21
    %p32 = scmp.eq.s32.totalorder %s12, 0
    %p33 = por %p31, %p32
    %p34 = scmp.ne.s32.totalorder %s20, %s21
    %p35 = scmp.eq.s32.totalorder %s13, 1
    %p36 = por %p34, %p35
    %p38 = scmp.ne.s32.totalorder %s21, %s37
    %p39 = scmp.eq.s32.totalorder %s13, 0
    %p40 = por %p38, %p39
    %s41 = ssub.s32 %s7, %s14
    %p42 = scmp.eq.s32.totalorder %s41, 0
    %s44 = sadd.s32 %s43, 1
    %s45 = scalar_select %p42, %s43, %s44
    %p48 = pneg %p42
    %p49 = scmp.eq.s32.totalorder %s7, 1
    %p50 = por %p48, %p49
    %p51 = scmp.ne.s32.totalorder %s43, %s46
    %p52 = scmp.eq.s32.totalorder %s7, 0
    %p53 = por %p51, %p52
    %p54 = scmp.ne.s32.totalorder %s43, %s46
    %p55 = scmp.eq.s32.totalorder %s12, 1
    %p56 = por %p54, %p55
    %p57 = scmp.ne.s32.totalorder %s46, %s47
    %p58 = scmp.eq.s32.totalorder %s12, 0
    %p59 = por %p57, %p58
    %p60 = scmp.ne.s32.totalorder %s46, %s47
    %p61 = scmp.eq.s32.totalorder %s13, 1
    %p62 = por %p60, %p61
    %p64 = scmp.ne.s32.totalorder %s47, %s63
    %p65 = scmp.eq.s32.totalorder %s13, 0
    %p66 = por %p64, %p65
    %p67 = scmp.le.s32.totalorder 1, %s7
    %p68 = scmp.lt.s32.totalorder %s7, 3
    %p69 = pnand %p67, %p68
    %p70 = pneg %p69
    // Predicated region
    $region9: #{forward.20} parent=5 // pred_check
      _
    $region10: #{forward.20} parent=5 // pred_check_branch
      %72 = sbr.rel (%p69) target = $region12
    $region11: #{forward.20} parent=5 // pred_region
      %s73 = ssub.s32 %s7, 1
    $region12: #{forward.20} parent=5 // pred_fallthru
      _
    %p74 = scmp.lt.s32.totalorder %s7, 2
    // Predicated region
    $region13: #{forward.20} parent=5 // pred_check
      %p75 = pneg %p74
    $region14: #{forward.20} parent=5 // pred_check_branch
      %77 = sbr.rel (%p75) target = $region16
    $region15: #{forward.20} parent=5 // pred_region
      // Predicated region
      $region17: #{forward.20} parent=15 // pred_check
        %p78 = pneg %p27
      $region18: #{forward.20} parent=15 // pred_check_branch
        %80 = sbr.rel (%p78) target = $region20
      $region19: #{forward.20} parent=15 // pred_region
        %p81 = scmp.lt.s32.totalorder %s7, 1
        %s82 = scalar_select %p81, %s7, 1
        %s83 = smul.addr %s82, 2
        %s84 = smul.addr %s83, 4
        %s85 = scalar_lea.vmem %s0, %s84
      $region20: #{forward.20} parent=15 // pred_fallthru
        _
    $region16: #{forward.20} parent=5 // pred_fallthru
      _
    %p86 = scmp.le.s32.totalorder 1, %s7
    %p87 = scmp.lt.s32.totalorder %s7, 3
    %p88 = pnand %p86, %p87
    %p89 = pneg %p88
    // Predicated region
    $region21: #{forward.20} parent=5 // pred_check
      _
    $region22: #{forward.20} parent=5 // pred_check_branch
      %91 = sbr.rel (%p88) target = $region24
    $region23: #{forward.20} parent=5 // pred_region
      %s92 = ssub.s32 %s7, 1
      %p93 = scmp.lt.s32.totalorder %s12, 1
      %s94 = scalar_select %p93, %s12, 1
      %s95 = smul.addr %s94, 2
      %s96 = smul.addr %s95, 4
      %s97 = scalar_lea.vmem %s0, %s96
      %p98 = pneg %p33
      %p99 = pneg %p30
      %p100 = pneg %p59
      %p101 = pneg %p56
      %p102 = scmp.lt.s32.totalorder %s12, 1
      %s103 = scalar_select %p102, %s12, 1
      %s104 = scalar_lea.vmem %s1, %s103
      %p105 = scmp.lt.s32.totalorder %s12, 1
      %s106 = scalar_select %p105, %s12, 1
      %s107 = smul.addr %s106, 2
      %s108 = smul.addr %s107, 4
      %s109 = scalar_lea.vmem %s0, %s108
      %p110 = scmp.lt.s32.totalorder %s12, 1
      %s111 = scalar_select %p110, %s12, 1
      %s112 = scalar_lea.vmem %s1, %s111
      %v113 = vld [vmem:[%s109] sm:$0xf]
      %v114 = vld [vmem:[%s109 + $0x4] sm:$0xf]
      %v115 = vunpack.c.l.bf16 %v113
      %v116 = vunpack.c.l.bf16 %v114
      %vm117 = vcmask 261120
      %v118 = vsel %vm117, %v115, -inf
      %v119 = vrot.slane %v118, 4
      %v120 = vmax.f32 %v118, %v119
      %v121 = vrot.slane %v120, 2
      %v122 = vmax.f32 %v120, %v121
      %v123 = vrot.slane %v122, 1
      %v124 = vmax.f32 %v122, %v123
      %v125 = vsel %vm117, %v116, -inf
      %v126 = vrot.slane %v125, 4
      %v127 = vmax.f32 %v125, %v126
      %v128 = vrot.slane %v127, 2
      %v129 = vmax.f32 %v127, %v128
      %v130 = vrot.slane %v129, 1
      %v131 = vmax.f32 %v129, %v130
      %v132 = vpack.c.bf16 %v124, %v124
      %v133 = vpack.c.bf16 %v131, %v131
      %v136 = vrot.slane %v132, 3
      %v137 = vrot.slane %v133, 3
      %vm138 = vcmask 1040384
      %v141 = vsel %vm138, %v132, %v136
      %v144 = vsel %vm138, %v133, %v137
      %145 = vst [vmem:[#allocation1] ss:$4 sm:$0xff] %v141
      %v146 = vld [vmem:[#allocation1] sm:$0xff]
      %s148 = scalar_lea.vmem [#allocation1], 32
      %149 = vst [vmem:[%s148] ss:$4 sm:$0xff] %v144
      %v150 = vld [vmem:[#allocation1 + $0x20] sm:$0xff]
      %v152 = vunpack.c.l.b16 %v146
      %v153 = vunpack.c.l.b16 %v150
      %v154 = vrot.slane %v153, 7
      %vm155 = vcmask 1041409
      %v156 = vsel %vm155, %v154, %v152
      %v157 = vpack.c.b16 %v156, %v156
      %v158 = vrot.slane %v157, 3
      %v161 = vsel %vm138, %v157, %v158
      %vm163 = vcmask 253952
      %164 = vst.msk [vmem:[%s112] sm:$0x1] %vm163, %v161
      %p165 = scmp.lt.s32.totalorder %s12, 1
      %s166 = scalar_select %p165, %s12, 1
      %s167 = scalar_lea.vmem %s1, %s166
      // Predicated region
      $region25: #{forward.20} parent=23 // pred_check
        %p168 = pneg %p56
      $region26: #{forward.20} parent=23 // pred_check_branch
        %170 = sbr.rel (%p168) target = $region28
      $region27: #{forward.20} parent=23 // pred_region
        _
      $region28: #{forward.20} parent=23 // pred_fallthru
        _
    $region24: #{forward.20} parent=5 // pred_fallthru
      _
    %p171 = scmp.le.s32.totalorder 2, %s7
    // Predicated region
    $region29: #{forward.20} parent=5 // pred_check
      %p172 = pneg %p171
    $region30: #{forward.20} parent=5 // pred_check_branch
      %174 = sbr.rel (%p172) target = $region32
    $region31: #{forward.20} parent=5 // pred_region
      %s175 = ssub.s32 %s7, 2
      // Predicated region
      $region33: #{forward.20} parent=31 // pred_check
        %p176 = pneg %p62
      $region34: #{forward.20} parent=31 // pred_check_branch
        %178 = sbr.rel (%p176) target = $region36
      $region35: #{forward.20} parent=31 // pred_region
        %p179 = scmp.lt.s32.totalorder %s13, 1
        %s180 = scalar_select %p179, %s13, 1
        %s181 = scalar_lea.vmem %s1, %s180
      $region36: #{forward.20} parent=31 // pred_fallthru
        _
    $region32: #{forward.20} parent=5 // pred_fallthru
      _
  $region6: #{forward.20} parent=0 // loop_footer
    %s11 = sadd.s32 1, %s7
  $region7: #{forward.20} parent=0 // loop_footer_branch
    %6 = sbr.rel target = $region3
  $region8: #{forward.20} parent=0 // loop_exit
    _

// kernel: forward.15
$region0: #{forward.15}
  #allocation0 [shape = 'u32[]', space=smem, size = 0x4, offset = 0x4, fixed_abs, tag = 'smem constant byte address 0x4 - core index']
  #allocation1 [shape = 'u32[72,128]{1,0:T(1,128)}', space=vmem, size = 0x9000, scoped, tag = 'internal scratch']
  %s0 = inlined_call_operand.vmem [shape: bf16[32,32], index: 0, kind: input, shape index: {}]
  %s1 = inlined_call_operand.vmem [shape: bf16[32,32], index: 1, kind: input, shape index: {}]
  %s2 = inlined_call_operand.vmem [shape: f32[1,32], index: 2, kind: input, shape index: {}]
  %s3 = inlined_call_operand.vmem [shape: bf16[32,32], index: 3, kind: input, shape index: {}]
  %s4 = inlined_call_operand.vmem [shape: f32[1,32], index: 4, kind: input, shape index: {}]
  %s5 = inlined_call_operand.vmem [shape: f32[1,32], index: 5, kind: input, shape index: {}]
  %s6 = inlined_call_operand.vmem [shape: f32[1,32], index: 6, kind: input, shape index: {}]
  %s7 = inlined_call_operand.vmem [shape: bf16[32,32], index: 7, kind: output, shape index: {}]
  %s8 = sld [smem:[#allocation0]]
  $region38: #{forward.15} parent=0
    _
  %s10 = ssub.s32 1, %s8
  %s11 = scalar_select 0, %s10, %s8
  // Predicated region
  $region2: #{forward.15} parent=0 // pred_check
    _
  $region3: #{forward.15} parent=0 // pred_check_branch
    %13 = sbr.rel (0) target = $region5
  $region4: #{forward.15} parent=0 // pred_region
    _
  $region5: #{forward.15} parent=0 // pred_fallthru
    _
  // Predicated region
  $region6: #{forward.15} parent=0 // pred_check
    _
  $region7: #{forward.15} parent=0 // pred_check_branch
    %15 = sbr.rel (0) target = $region9
  $region8: #{forward.15} parent=0 // pred_region
    _
  $region9: #{forward.15} parent=0 // pred_fallthru
    _
  // Predicated region
  $region10: #{forward.15} parent=0 // pred_check
    _
  $region11: #{forward.15} parent=0 // pred_check_branch
    %17 = sbr.rel (0) target = $region13
  $region12: #{forward.15} parent=0 // pred_region
    _
  $region13: #{forward.15} parent=0 // pred_fallthru
    _
  // Predicated region
  $region14: #{forward.15} parent=0 // pred_check
    _
  $region15: #{forward.15} parent=0 // pred_check_branch
    %19 = sbr.rel (0) target = $region17
  $region16: #{forward.15} parent=0 // pred_region
    _
  $region17: #{forward.15} parent=0 // pred_fallthru
    _
  // Predicated region
  $region18: #{forward.15} parent=0 // pred_check
    _
  $region19: #{forward.15} parent=0 // pred_check_branch
    %21 = sbr.rel (0) target = $region21
  $region20: #{forward.15} parent=0 // pred_region
    _
  $region21: #{forward.15} parent=0 // pred_fallthru
    _
  // Predicated region
  $region22: #{forward.15} parent=0 // pred_check
    _
  $region23: #{forward.15} parent=0 // pred_check_branch
    %23 = sbr.rel (0) target = $region25
  $region24: #{forward.15} parent=0 // pred_region
    _
  $region25: #{forward.15} parent=0 // pred_fallthru
    _
  // Predicated region
  $region26: #{forward.15} parent=0 // pred_check
    _
  $region27: #{forward.15} parent=0 // pred_check_branch
    %25 = sbr.rel (0) target = $region29
  $region28: #{forward.15} parent=0 // pred_region
    _
  $region29: #{forward.15} parent=0 // pred_fallthru
    _
  %v27 = vld [vmem:[%s0] sm:$0xf]
  %v28 = vld [vmem:[%s0 + $0x4] sm:$0xf]
  %v29 = vld [vmem:[%s0 + $0x8] sm:$0xf]
  %v30 = vld [vmem:[%s0 + $0xc] sm:$0xf]
  %v31 = vld [vmem:[%s1] sm:$0xf]
  %v32 = vld [vmem:[%s1 + $0x4] sm:$0xf]
  %v33 = vld [vmem:[%s1 + $0x8] sm:$0xf]
  %v34 = vld [vmem:[%s1 + $0xc] sm:$0xf]
  %v35 = vld [vmem:[%s2] sm:$0x1]
  %v37 = vperm.slane %v35, 0
  %v43 = vunpack.c.l.b16 %v27
  %v44 = vunpack.c.l.b16 %v28
  %v45 = vunpack.c.l.b16 %v29
  %v46 = vunpack.c.l.b16 %v30
  %v47 = vpack.c.b16 %v44, %v43
  %v48 = vpack.c.b16 %v46, %v45
  %v53 = vunpack.c.l.b16 %v31
  %v54 = vunpack.c.l.b16 %v32
  %v55 = vunpack.c.l.b16 %v33
  %v56 = vunpack.c.l.b16 %v34
  %v57 = vpack.c.b16 %v54, %v53
  %v58 = vpack.c.b16 %v56, %v55
  %vm61 = vcmask 261120
  %v63 = vsel %vm61, %v47, 0
  %v66 = vsel %vm61, %v48, 0
  %68 = vmatpush.bf16.msra.mxu0 0
  %69 = vmatpush.bf16.msra.mxu0 0
  %70 = vmatpush.bf16.msra.mxu0 0
  %71 = vmatpush.bf16.msra.mxu0 0
  %72 = vmatpush.bf16.msra.mxu0 0
  %73 = vmatpush.bf16.msra.mxu0 0
  %74 = vmatpush.bf16.msra.mxu0 %v58
  %75 = vmatpush.bf16.msra.mxu0 %v57
  %76 = vmatmul.bf16.gmra.mxu0 %v63
  %v77 = vpop.f32.mrf.mxu0
  %v78 = vadd.f32 %v37, %v77
  %v79 = vpop.f32.mrf.mxu0
  %v80 = vadd.f32 %v37, %v79
  %81 = vmatmul.bf16.gmra.mxu0 %v66
  %v82 = vpop.f32.mrf.mxu0
  %v83 = vadd.f32 %v37, %v82
  %v84 = vpop.f32.mrf.mxu0
  %v85 = vadd.f32 %v37, %v84
  %86 = vdwg.mxu0
  %v87 = vmax.f32 %v78, 0.0
  %v88 = vmax.f32 %v80, 0.0
  %v89 = vmax.f32 %v83, 0.0
  %v90 = vmax.f32 %v85, 0.0
  %v91 = vpack.c.bf16 %v88, %v87
  %v92 = vpack.c.bf16 %v90, %v89
  %v93 = vld [vmem:[%s3] sm:$0xf]
  %v94 = vld [vmem:[%s3 + $0x4] sm:$0xf]
  %v95 = vld [vmem:[%s3 + $0x8] sm:$0xf]
  %v96 = vld [vmem:[%s3 + $0xc] sm:$0xf]
  %v97 = vld [vmem:[%s4] sm:$0x1]
  %v99 = vperm.slane %v97, 0
  %v105 = vunpack.c.l.b16 %v93
  %v106 = vunpack.c.l.b16 %v94
  %v107 = vunpack.c.l.b16 %v95
  %v108 = vunpack.c.l.b16 %v96
  %v109 = vpack.c.b16 %v106, %v105
  %v110 = vpack.c.b16 %v108, %v107
  %v114 = vsel %vm61, %v91, 0
  %v117 = vsel %vm61, %v92, 0
  %119 = vmatpush.bf16.msra.mxu0 0
  %120 = vmatpush.bf16.msra.mxu0 0
  %121 = vmatpush.bf16.msra.mxu0 0
  %122 = vmatpush.bf16.msra.mxu0 0
  %123 = vmatpush.bf16.msra.mxu0 0
  %124 = vmatpush.bf16.msra.mxu0 0
  %125 = vmatpush.bf16.msra.mxu0 %v110
  %126 = vmatpush.bf16.msra.mxu0 %v109
  %127 = vmatmul.bf16.gmra.mxu0 %v114
  %v128 = vpop.f32.mrf.mxu0
  %v129 = vadd.f32 %v99, %v128
  %v130 = vpop.f32.mrf.mxu0
  %v131 = vadd.f32 %v99, %v130
  %132 = vmatmul.bf16.gmra.mxu0 %v117
  %v133 = vpop.f32.mrf.mxu0
  %v134 = vadd.f32 %v99, %v133
  %v135 = vpop.f32.mrf.mxu0
  %v136 = vadd.f32 %v99, %v135
  %137 = vdwg.mxu0
  %v138 = vunpack.c.l.bf16 %v27
  %v139 = vunpack.c.l.bf16 %v28
  %v140 = vunpack.c.l.bf16 %v29
  %v141 = vunpack.c.l.bf16 %v30
  %v142 = vadd.f32 %v138, %v129
  %v143 = vadd.f32 %v139, %v131
  %v144 = vadd.f32 %v140, %v134
  %v145 = vadd.f32 %v141, %v136
  %v146 = vsel %vm61, %v142, 0.0
  %147 = vadd.xlane.f32.xlu0 %v146
  %v148 = vpop.xlane.xlu0 %147
  %v149 = vsel %vm61, %v143, 0.0
  %150 = vadd.xlane.f32.xlu0 %v149
  %v151 = vpop.xlane.xlu0 %150
  %v152 = vsel %vm61, %v144, 0.0
  %153 = vadd.xlane.f32.xlu0 %v152
  %v154 = vpop.xlane.xlu0 %153
  %v155 = vsel %vm61, %v145, 0.0
  %156 = vadd.xlane.f32.xlu0 %v155
  %v157 = vpop.xlane.xlu0 %156
  %v158 = vrcp.pop 32.0
  %v159 = vmul.f32 32.0, %v158
  %v160 = vsub.f32 1.0, %v159
  %v161 = vmul.f32 %v158, %v160
  %v162 = vadd.f32 %v158, %v161
  %vm163 = vweird.f32 %v158
  %v164 = vsel %vm163, %v158, %v162
  %v165 = vmul.f32 %v148, %v164
  %v166 = vmul.f32 %v151, %v164
  %v167 = vmul.f32 %v154, %v164
  %v168 = vmul.f32 %v157, %v164
  %v169 = vsub.f32 %v142, %v165
  %v170 = vsub.f32 %v143, %v166
  %v171 = vsub.f32 %v144, %v167
  %v172 = vsub.f32 %v145, %v168
  %v173 = vmul.f32 %v169, %v169
  %v174 = vmul.f32 %v170, %v170
  %v175 = vmul.f32 %v171, %v171
  %v176 = vmul.f32 %v172, %v172
  %v177 = vsel %vm61, %v173, 0.0
  %178 = vadd.xlane.f32.xlu0 %v177
  %v179 = vpop.xlane.xlu0 %178
  %v180 = vsel %vm61, %v174, 0.0
  %181 = vadd.xlane.f32.xlu0 %v180
  %v182 = vpop.xlane.xlu0 %181
  %v183 = vsel %vm61, %v175, 0.0
  %184 = vadd.xlane.f32.xlu0 %v183
  %v185 = vpop.xlane.xlu0 %184
  %v186 = vsel %vm61, %v176, 0.0
  %187 = vadd.xlane.f32.xlu0 %v186
  %v188 = vpop.xlane.xlu0 %187
  %v189 = vmul.f32 %v179, %v164
  %v190 = vmul.f32 %v182, %v164
  %v191 = vmul.f32 %v185, %v164
  %v192 = vmul.f32 %v188, %v164
  %v193 = vadd.f32 %v189, 1e-05
  %v194 = vadd.f32 %v190, 1e-05
  %v195 = vadd.f32 %v191, 1e-05
  %v196 = vadd.f32 %v192, 1e-05
  %v197 = vrsqrt.pop %v193
  %v198 = vmul.f32 %v197, %v193
  %v199 = vmul.f32 %v198, %v197
  %v200 = vmul.f32 0.5, %v199
  %v201 = vsub.f32 1.5, %v200
  %v202 = vmul.f32 %v197, %v201
  %vm203 = vweird.f32 %v193
  %vm204 = vweird.f32 %v197
  %vm205 = vmor %vm203, %vm204
  %v206 = vsel %vm205, %v197, %v202
  %v207 = vrsqrt.pop %v194
  %v208 = vmul.f32 %v207, %v194
  %v209 = vmul.f32 %v208, %v207
  %v210 = vmul.f32 0.5, %v209
  %v211 = vsub.f32 1.5, %v210
  %v212 = vmul.f32 %v207, %v211
  %vm213 = vweird.f32 %v194
  %vm214 = vweird.f32 %v207
  %vm215 = vmor %vm213, %vm214
  %v216 = vsel %vm215, %v207, %v212
  %v217 = vrsqrt.pop %v195
  %v218 = vmul.f32 %v217, %v195
  %v219 = vmul.f32 %v218, %v217
  %v220 = vmul.f32 0.5, %v219
  %v221 = vsub.f32 1.5, %v220
  %v222 = vmul.f32 %v217, %v221
  %vm223 = vweird.f32 %v195
  %vm224 = vweird.f32 %v217
  %vm225 = vmor %vm223, %vm224
  %v226 = vsel %vm225, %v217, %v222
  %v227 = vrsqrt.pop %v196
  %v228 = vmul.f32 %v227, %v196
  %v229 = vmul.f32 %v228, %v227
  %v230 = vmul.f32 0.5, %v229
  %v231 = vsub.f32 1.5, %v230
  %v232 = vmul.f32 %v227, %v231
  %vm233 = vweird.f32 %v196
  %vm234 = vweird.f32 %v227
  %vm235 = vmor %vm233, %vm234
  %v236 = vsel %vm235, %v227, %v232
  %v237 = vmul.f32 %v169, %v206
  %v238 = vmul.f32 %v170, %v216
  %v239 = vmul.f32 %v171, %v226
  %v240 = vmul.f32 %v172, %v236
  %v241 = vld [vmem:[%s5] sm:$0x1]
  %v243 = vperm.slane %v241, 0
  %v245 = vmul.f32 %v237, %v243
  %v246 = vmul.f32 %v238, %v243
  %v247 = vmul.f32 %v239, %v243
  %v248 = vmul.f32 %v240, %v243
  %v249 = vld [vmem:[%s6] sm:$0x1]
  %v251 = vperm.slane %v249, 0
  %v253 = vadd.f32 %v245, %v251
  %v254 = vadd.f32 %v246, %v251
  %v255 = vadd.f32 %v247, %v251
  %v256 = vadd.f32 %v248, %v251
  %v257 = vpack.c.bf16 %v253, %v253
  %v258 = vpack.c.bf16 %v254, %v254
  %v259 = vpack.c.bf16 %v255, %v255
  %v260 = vpack.c.bf16 %v256, %v256
  %vm261 = vcmask 257024
  %262 = vst.msk [vmem:[%s7] sm:$0xf] %vm261, %v257
  %263 = vst.msk [vmem:[%s7 + $0x4] sm:$0xf] %vm261, %v258
  %264 = vst.msk [vmem:[%s7 + $0x8] sm:$0xf] %vm261, %v259
  %265 = vst.msk [vmem:[%s7 + $0xc] sm:$0xf] %vm261, %v260
  // Predicated region
  $region30: #{forward.15} parent=0 // pred_check
    _
  $region31: #{forward.15} parent=0 // pred_check_branch
    %267 = sbr.rel (0) target = $region33
  $region32: #{forward.15} parent=0 // pred_region
    _
  $region33: #{forward.15} parent=0 // pred_fallthru
    _
  // Predicated region
  $region34: #{forward.15} parent=0 // pred_check
    _
  $region35: #{forward.15} parent=0 // pred_check_branch
    %269 = sbr.rel (0) target = $region37
  $region36: #{forward.15} parent=0 // pred_region
    _
  $region37: #{forward.15} parent=0 // pred_fallthru
    _

// kernel: forward.21
$region0: #{forward.21}
  #allocation0 [shape = 'u32[]', space=smem, size = 0x4, offset = 0x4, fixed_abs, tag = 'smem constant byte address 0x4 - core index']
  #allocation1 [shape = 'u32[72,128]{1,0:T(1,128)}', space=vmem, size = 0x9000, scoped, tag = 'internal scratch']
  %s0 = inlined_call_operand.vmem [shape: bf16[2,64], index: 0, kind: input, shape index: {}]
  %s1 = inlined_call_operand.vmem [shape: bf16[64,32], index: 1, kind: input, shape index: {}]
  %s2 = inlined_call_operand.vmem [shape: f32[1,32], index: 2, kind: input, shape index: {}]
  %s3 = inlined_call_operand.vmem [shape: bf16[32,10], index: 3, kind: input, shape index: {}]
  %s4 = inlined_call_operand.vmem [shape: f32[1,10], index: 4, kind: input, shape index: {}]
  %s5 = inlined_call_operand.hbm [shape: f32[2,10], index: 5, kind: output, shape index: {}]
  %s6 = sld [smem:[#allocation0]]
  $region30: #{forward.21} parent=0
    _
  %s8 = ssub.s32 1, %s6
  %s9 = scalar_select 0, %s8, %s6
  $region1: #{forward.21} parent=0
    #allocation2 [shape = 'u8[1024]{0}', space=vmem, size = 0x400, scoped, tag = 'output window, operand 0, single buffered']
    #allocation3 [shape = 's32[1]{0}', space=sflag, size = 0x4, scoped, tag = 'scoped memory for forward.21']
    %10 = vsyncpa [#allocation3], 0
    // Predicated region
    $region2: #{forward.21} parent=1 // pred_check
      _
    $region3: #{forward.21} parent=1 // pred_check_branch
      %12 = sbr.rel (0) target = $region5
    $region4: #{forward.21} parent=1 // pred_region
      _
    $region5: #{forward.21} parent=1 // pred_fallthru
      _
    // Predicated region
    $region6: #{forward.21} parent=1 // pred_check
      _
    $region7: #{forward.21} parent=1 // pred_check_branch
      %14 = sbr.rel (0) target = $region9
    $region8: #{forward.21} parent=1 // pred_region
      _
    $region9: #{forward.21} parent=1 // pred_fallthru
      _
    // Predicated region
    $region10: #{forward.21} parent=1 // pred_check
      _
    $region11: #{forward.21} parent=1 // pred_check_branch
      %16 = sbr.rel (0) target = $region13
    $region12: #{forward.21} parent=1 // pred_region
      _
    $region13: #{forward.21} parent=1 // pred_fallthru
      _
    // Predicated region
    $region14: #{forward.21} parent=1 // pred_check
      _
    $region15: #{forward.21} parent=1 // pred_check_branch
      %18 = sbr.rel (0) target = $region17
    $region16: #{forward.21} parent=1 // pred_region
      _
    $region17: #{forward.21} parent=1 // pred_fallthru
      _
    // Predicated region
    $region18: #{forward.21} parent=1 // pred_check
      _
    $region19: #{forward.21} parent=1 // pred_check_branch
      %20 = sbr.rel (0) target = $region21
    $region20: #{forward.21} parent=1 // pred_region
      _
    $region21: #{forward.21} parent=1 // pred_fallthru
      _
    %v22 = vld [vmem:[%s0] sm:$0x1]
    %v23 = vld [vmem:[%s1] sm:$0xf]
    %v24 = vld [vmem:[%s1 + $0x4] sm:$0xf]
    %v25 = vld [vmem:[%s1 + $0x8] sm:$0xf]
    %v26 = vld [vmem:[%s1 + $0xc] sm:$0xf]
    %v27 = vld [vmem:[%s1 + $0x10] sm:$0xf]
    %v28 = vld [vmem:[%s1 + $0x14] sm:$0xf]
    %v29 = vld [vmem:[%s1 + $0x18] sm:$0xf]
    %v30 = vld [vmem:[%s1 + $0x1c] sm:$0xf]
    %v31 = vld [vmem:[%s2] sm:$0x1]
    %v33 = vperm.slane %v31, 0
    %v43 = vunpack.c.l.b16 %v23
    %v44 = vunpack.c.l.b16 %v24
    %v45 = vunpack.c.l.b16 %v25
    %v46 = vunpack.c.l.b16 %v26
    %v47 = vunpack.c.l.b16 %v27
    %v48 = vunpack.c.l.b16 %v28
    %v49 = vunpack.c.l.b16 %v29
    %v50 = vunpack.c.l.b16 %v30
    %v51 = vpack.c.b16 %v44, %v43
    %v52 = vpack.c.b16 %v46, %v45
    %v53 = vpack.c.b16 %v48, %v47
    %v54 = vpack.c.b16 %v50, %v49
    %vm59 = vcmask 523264
    %v61 = vsel %vm59, %v22, 0
    %63 = vmatpush.bf16.msra.mxu0 0
    %64 = vmatpush.bf16.msra.mxu0 0
    %65 = vmatpush.bf16.msra.mxu0 0
    %66 = vmatpush.bf16.msra.mxu0 0
    %67 = vmatpush.bf16.msra.mxu0 %v54
    %68 = vmatpush.bf16.msra.mxu0 %v53
    %69 = vmatpush.bf16.msra.mxu0 %v52
    %70 = vmatpush.bf16.msra.mxu0 %v51
    %71 = vmatmul.bf16.gmra.mxu0 %v61
    %v72 = vpop.f32.mrf.mxu0
    %v73 = vadd.f32 %v33, %v72
    %v74 = vpop.f32.mrf.mxu0
    %75 = vdwg.mxu0
    %v76 = vmax.f32 %v73, 0.0
    %v77 = vpack.c.bf16 %v76, %v76
    %v78 = vld [vmem:[%s3] sm:$0xf]
    %v79 = vld [vmem:[%s3 + $0x4] sm:$0xf]
    %v80 = vld [vmem:[%s3 + $0x8] sm:$0xf]
    %v81 = vld [vmem:[%s3 + $0xc] sm:$0xf]
    %v82 = vld [vmem:[%s4] sm:$0x1]
    %v84 = vperm.slane %v82, 0
    %v90 = vunpack.c.l.b16 %v78
    %v91 = vunpack.c.l.b16 %v79
    %v92 = vunpack.c.l.b16 %v80
    %v93 = vunpack.c.l.b16 %v81
    %v94 = vpack.c.b16 %v91, %v90
    %v95 = vpack.c.b16 %v93, %v92
    %vm98 = vcmask 261120
    %v100 = vsel %vm98, %v77, 0
    %102 = vmatpush.bf16.msra.mxu0 0
    %103 = vmatpush.bf16.msra.mxu0 0
    %104 = vmatpush.bf16.msra.mxu0 0
    %105 = vmatpush.bf16.msra.mxu0 0
    %106 = vmatpush.bf16.msra.mxu0 0
    %107 = vmatpush.bf16.msra.mxu0 0
    %108 = vmatpush.bf16.msra.mxu0 %v95
    %109 = vmatpush.bf16.msra.mxu0 %v94
    %110 = vmatmul.bf16.gmra.mxu0 %v100
    %v111 = vpop.f32.mrf.mxu0
    %v112 = vadd.f32 %v84, %v111
    %v113 = vpop.f32.mrf.mxu0
    %114 = vdwg.mxu0
    %v115 = vsub.f32 0.0, %v112
    %v116 = vmul.f32 %v115, 1.442695
    %v117 = vpow.pop %v116
    %v118 = vadd.f32 %v117, 1.0
    %v119 = vrcp.pop %v118
    %v120 = vmul.f32 %v118, %v119
    %v121 = vsub.f32 1.0, %v120
    %v122 = vmul.f32 %v119, %v121
    %v123 = vadd.f32 %v119, %v122
    %vm124 = vweird.f32 %v118
    %vm125 = vweird.f32 %v119
    %vm126 = vmor %vm124, %vm125
    %v127 = vsel %vm126, %v119, %v123
    %v128 = vand.u32 2147483647, %v118
    %vm129 = vcmp.eq.f32.partialorder %v128, 8.507059e+37
    %v130 = vand.u32 %v118, 2147483648
    %v131 = vor.u32 1.1754944e-38, %v130
    %v132 = vsel %vm129, %v131, %v127
    %v133 = vmul.f32 1.0, %v132
    %vm134 = vcmask 74752
    %135 = vst.msk [vmem:[#allocation2] sm:$0x3] %vm134, %v133
    // Predicated region
    $region22: #{forward.21} parent=1 // pred_check
      _
    $region23: #{forward.21} parent=1 // pred_check_branch
      %137 = sbr.rel (0) target = $region25
    $region24: #{forward.21} parent=1 // pred_region
      %139 = vsyncadd [#allocation3], 0
      %s141 = sshll.u32 [#allocation2], 4
      %s142 = int_to_ptr.vmem [resolvable:$true] %s141
      %s143 = sshll.u32 %s5, 4
      %s144 = int_to_ptr.hbm [resolvable:$true] %s143
      %146 = dma.vmem_to_hbm [thread:$0]  %s142, 32, %s144, [#allocation3]
    $region25: #{forward.21} parent=1 // pred_fallthru
      _
    // Predicated region
    $region26: #{forward.21} parent=1 // pred_check
      _
    $region27: #{forward.21} parent=1 // pred_check_branch
      %148 = sbr.rel (0) target = $region29
    $region28: #{forward.21} parent=1 // pred_region
      %150 = dma.done [#allocation3], 32
    $region29: #{forward.21} parent=1 // pred_fallthru
      _
    %151 = vsyncpa [#allocation3], 1

</llo_original>
